<compile_context>
chip_gen: v5e
topology: v5e:2x2
jax: 0.10.0
libtpu: 0.0.40
codegen_flags: <defaults>
</compile_context>

<pallas_src>
import jax
import jax.numpy as jnp
from jax import lax
from jax.experimental import pallas as pl
from jax.experimental.pallas import tpu as pltpu  # noqa: F401  (kept for clarity)

# ---------------- configuration (small, deterministic) ----------------
BATCH = 2
SEQ_LEN = 8        # max_length
VOCAB = 50
EMB_SIZE = 32
HIDDEN = 32        # hidden_size  (BiLSTM output width = 2 * HIDDEN, 4H = 128)
NUM_LABELS = 8
LINEAR_MID = 16    # linear_size = [16]
PADDING_IDX = 0


# ============ fused BiLSTM + MLAttention + MLLinear + EASE kernel ============
def _fused_kernel(emb_ref, mask_ref, cmask_ref,
                  win_ref, bin_ref, whf_ref, whb_ref,
                  wa_ref, w1t_ref, b1_ref, wo_ref, bo_ref, bwt_ref,
                  out_ref):
    """All operands live fully in VMEM (grid-less single invocation).

    emb_ref   (T*B, E)   bf16  time-major flattened embeddings (row = t*B + b)
    mask_ref  (T*B, 1)   f32   1.0 for valid token, 0.0 for padding
    cmask_ref (B*L, T*B) f32   row b*L+l: 1.0 iff column belongs to batch b AND valid
    win_ref   (E, 8H)    bf16  fused [fwd | bwd] input->gate weights (i,f,g,o)
    bin_ref   (1, 8H)    f32   fused [fwd | bwd] biases (b_ih + b_hh folded)
    whf/whb   (H, 4H)    bf16  fused hidden->gate weights per direction
    wa_ref    (B*L, 2H)  f32   MLAttention weight, pre-tiled over batch
    w1t (2H,M), b1 (1,M), wo (1,M), bo (1,1)   MLLinear
    bwt       (L, L)     f32   EASE adjacency B, stored transposed (B^T)
    out_ref   (B, L)     f32
    """
    TB, _ = emb_ref.shape
    B, L = out_ref.shape
    T = TB // B
    H = whf_ref.shape[0]
    H4 = 4 * H

    # ---- hoisted, loop-invariant loads ----
    emb = emb_ref[...]                      # (T*B, E) bf16
    vmask = mask_ref[...] > 0.5             # (T*B, 1) bool
    whf = whf_ref[...]                      # (H, 4H)  bf16
    whb = whb_ref[...]

    # ---- ONE fused input projection for both directions (off critical path),
    #      bf16 MXU operands, f32 accumulation, bias folded in ----
    xp = jnp.dot(emb, win_ref[...], preferred_element_type=jnp.float32) + bin_ref[...]
    xpf = xp[:, 0:H4]                       # (T*B, 4H)  free 128-lane split
    xpb = xp[:, H4:2 * H4]

    def cell(xg, h, c, whh, valid):
        # xg: (B, 4H) precomputed x@W_ih + b ; ONE (B,H)@(H,4H) bf16 matmul/step,
        # kept in accumulation form so the add can fold into the MXU pop path.
        g = xg + jnp.dot(h.astype(jnp.bfloat16), whh,
                         preferred_element_type=jnp.float32)          # (B, 4H) f32
        i_g = jax.nn.sigmoid(g[:, 0:H])
        f_g = jax.nn.sigmoid(g[:, H:2 * H])
        g_g = jnp.tanh(g[:, 2 * H:3 * H])
        o_g = jax.nn.sigmoid(g[:, 3 * H:4 * H])
        c_new = f_g * c + i_g * g_g
        h_new = o_g * jnp.tanh(c_new)
        # pack_padded_sequence semantics: state advances only on valid tokens.
        h_out = jnp.where(valid, h_new, h)  # single vsel on the serial chain
        c_out = jnp.where(valid, c_new, c)
        return h_out, c_out

    zeros = jnp.zeros((B, H), jnp.float32)
    hf, cf = zeros, zeros
    hb, cb = zeros, zeros
    out_f = [None] * T
    out_b = [None] * T

    # ---- interleaved fwd/bwd recurrence, fully unrolled (T static & small);
    #      outputs stay in vregs (no VMEM scratch) ----
    for i in range(T):
        tf, tb = i, T - 1 - i
        vf = vmask[tf * B:(tf + 1) * B, :]
        vb = vmask[tb * B:(tb + 1) * B, :]
        hf, cf = cell(xpf[tf * B:(tf + 1) * B, :], hf, cf, whf, vf)
        hb, cb = cell(xpb[tb * B:(tb + 1) * B, :], hb, cb, whb, vb)
        # pad_packed_sequence: padded positions produce zero output.
        out_f[tf] = jnp.where(vf, hf, 0.0)
        out_b[tb] = jnp.where(vb, hb, 0.0)

    rnn_f = jnp.concatenate(out_f, axis=0)                 # (T*B, H)
    rnn_b = jnp.concatenate(out_b, axis=0)                 # (T*B, H)
    rnn = jnp.concatenate([rnn_f, rnn_b], axis=1)          # (T*B, 2H) f32, in vregs

    # ---- MLAttention + MLLinear + EASE head: fully batched (one pass) ----
    # scores[b*L+l, t*B+b'] = wa[l] . rnn[t, b']
    scores = lax.dot_general(wa_ref[...], rnn, (((1,), (1,)), ((), ())),
                             preferred_element_type=jnp.float32)      # (B*L, T*B)
    s = jnp.where(cmask_ref[...] > 0.5, scores, -1e30)     # finite mask (NaN-safe)
    smax = jnp.max(s, axis=-1, keepdims=True)
    p = jnp.exp(s - smax)                                  # exactly 0 at masked cols
    p = p * pl.reciprocal(jnp.sum(p, axis=-1, keepdims=True), approx=True)
    attn = jnp.dot(p, rnn, preferred_element_type=jnp.float32)        # (B*L, 2H)
    h1 = jnp.maximum(
        jnp.dot(attn, w1t_ref[...], preferred_element_type=jnp.float32)
        + b1_ref[...], 0.0)                                            # (B*L, M)
    # logits, flat over (batch, label):  lf[0, b*L + l]
    lf = lax.dot_general(wo_ref[...], h1, (((1,), (1,)), ((), ())),
                         preferred_element_type=jnp.float32)           # (1, B*L)
    # unflatten to (B, L) with cheap static lane slices + tiny sublane concat
    logits = jnp.concatenate([lf[:, b * L:(b + 1) * L] for b in range(B)],
                             axis=0) + bo_ref[...]                     # (B, L)
    ease = jnp.dot(logits, bwt_ref[...], preferred_element_type=jnp.float32)  # (B, L)
    out_ref[...] = jnp.maximum(ease, 0.0) + logits         # relu + skip connection


# ======================= end-to-end forward =======================
def ease_attention_rnn_forward(token_ids, params):
    """token_ids (B, T) int32 -> (B, num_labels) f32.  Fully jittable."""
    B, T = token_ids.shape
    H, L = HIDDEN, NUM_LABELS

    # Embedding lookup directly into the time-major flattened layout the
    # kernel wants (row = t*B + b); tiny XLA glue, no big transposes.
    ids_tm = token_ids.T.reshape(-1)                                   # (T*B,)
    emb_flat = jnp.take(params["emb_table"], ids_tm, axis=0)           # (T*B, E)
    emb_flat = emb_flat.astype(jnp.bfloat16)                           # MXU operand
    valid = (ids_tm != PADDING_IDX).astype(jnp.float32)                # (T*B,)
    mask_flat = valid[:, None]                                         # (T*B, 1)
    # per-(batch,label)-row column mask: column c = t*B + b' belongs to batch c % B
    batch_of_col = jnp.tile(jnp.arange(B, dtype=jnp.int32), T)         # (T*B,)
    cmask = ((batch_of_col[None, :] == jnp.arange(B, dtype=jnp.int32)[:, None])
             .astype(jnp.float32) * valid[None, :])                    # (B, T*B)
    cmask_exp = jnp.repeat(cmask, L, axis=0)                           # (B*L, T*B)

    # Param repacking for the kernel (tiny, one-shot XLA glue):
    #   fused [fwd|bwd] input projection, bf16 recurrence weights, tiled wa.
    w_in = jnp.concatenate([params["wif"], params["wib"]], axis=1).astype(jnp.bfloat16)
    b_in = jnp.concatenate([params["bf"], params["bb"]], axis=1)       # (1, 8H) f32
    whf = params["whf"].astype(jnp.bfloat16)
    whb = params["whb"].astype(jnp.bfloat16)
    wa_t = jnp.tile(params["wa"], (B, 1))                              # (B*L, 2H)

    return pl.pallas_call(
        _fused_kernel,
        out_shape=jax.ShapeDtypeStruct((B, L), jnp.float32),
    )(emb_flat, mask_flat, cmask_exp,
      w_in, b_in, whf, whb,
      wa_t, params["w1t"], params["b1"],
      params["wo"], params["bo"], params["bwt"])


# ======================= deterministic parameters =======================
def _uniform(key, shape, scale):
    return jax.random.uniform(key, shape, jnp.float32, -scale, scale)


def init_params(key):
    ks = jax.random.split(key, 12)
    E, H, L, M = EMB_SIZE, HIDDEN, NUM_LABELS, LINEAR_MID
    H2, H4 = 2 * H, 4 * H
    k_lstm = 1.0 / float(jnp.sqrt(H))
    emb_table = jax.random.normal(ks[0], (VOCAB, E), jnp.float32) * 0.1
    emb_table = emb_table.at[PADDING_IDX].set(0.0)
    # NOTE: BiLSTM weights are stored fused & transposed: (in, 4H) with gate
    # order i,f,g,o on the output axis, and b = b_ih + b_hh pre-folded.  If
    # importing real PyTorch nn.LSTM weights, concatenate/transpose/fold to
    # match this layout.
    params = dict(
        emb_table=emb_table,
        wif=_uniform(ks[1], (E, H4), k_lstm),
        whf=_uniform(ks[2], (H, H4), k_lstm),
        bf=_uniform(ks[3], (1, H4), k_lstm),
        wib=_uniform(ks[4], (E, H4), k_lstm),
        whb=_uniform(ks[5], (H, H4), k_lstm),
        bb=_uniform(ks[6], (1, H4), k_lstm),
        # MLAttention weight (num_labels, 2H), xavier_uniform.
        wa=_uniform(ks[7], (L, H2), float(jnp.sqrt(6.0 / (L + H2)))),
        # MLLinear: Linear(2H->M) (stored transposed) + Linear(M->1).
        w1t=_uniform(ks[8], (H2, M), float(jnp.sqrt(6.0 / (H2 + M)))),
        b1=_uniform(ks[9], (1, M), 1.0 / float(jnp.sqrt(H2))),
        wo=_uniform(ks[10], (1, M), float(jnp.sqrt(6.0 / (M + 1)))),
        bo=_uniform(ks[11], (1, 1), 1.0 / float(jnp.sqrt(M))),
        # EASE adjacency B (L,L), xavier_uniform (random_init=True), stored B^T.
        bwt=_uniform(jax.random.fold_in(key, 123), (L, L),
                     float(jnp.sqrt(6.0 / (L + L)))),
    )
    return params


# ======================= pure-JAX reference (f32) =======================
def _reference_forward(token_ids, params):
    emb_out = jnp.take(params["emb_table"], token_ids, axis=0)   # (B,T,E)
    maskf = (token_ids != PADDING_IDX).astype(jnp.float32)       # (B,T)
    B, T, _ = emb_out.shape
    H = HIDDEN

    def run_dir(wih, whh, b, reverse):
        h = jnp.zeros((B, H), jnp.float32)
        c = jnp.zeros((B, H), jnp.float32)
        outs = [None] * T
        t_order = range(T - 1, -1, -1) if reverse else range(T)
        for t in t_order:
            x = emb_out[:, t, :]
            m = maskf[:, t][:, None]
            g = x @ wih + h @ whh + b                       # (B, 4H)
            i_g = jax.nn.sigmoid(g[:, 0:H])
            f_g = jax.nn.sigmoid(g[:, H:2 * H])
            g_g = jnp.tanh(g[:, 2 * H:3 * H])
            o_g = jax.nn.sigmoid(g[:, 3 * H:4 * H])
            c_new = f_g * c + i_g * g_g
            h_new = o_g * jnp.tanh(c_new)
            h = m * h_new + (1.0 - m) * h
            c = m * c_new + (1.0 - m) * c
            outs[t] = h * m
        return jnp.stack(outs, axis=1)                      # (B,T,H)

    out_f = run_dir(params["wif"], params["whf"], params["bf"], False)
    out_b = run_dir(params["wib"], params["whb"], params["bb"], True)
    rnn = jnp.concatenate([out_f, out_b], axis=-1)          # (B,T,2H)

    scores = jnp.einsum("lh,bth->blt", params["wa"], rnn)
    scores = jnp.where(maskf[:, None, :] > 0.5, scores, -jnp.inf)
    p = jax.nn.softmax(scores, axis=-1)
    attn = jnp.einsum("blt,bth->blh", p, rnn)               # (B,L,2H)
    h1 = jax.nn.relu(attn @ params["w1t"] + params["b1"])
    logits = jnp.einsum("blm,m->bl", h1, params["wo"][0]) + params["bo"][0, 0]
    ease = logits @ params["bwt"]
    return jax.nn.relu(ease) + logits


# ======================= main =======================
if __name__ == "__main__":
    key = jax.random.PRNGKey(0)
    params = init_params(key)
    ids = jax.random.randint(jax.random.fold_in(key, 7), (BATCH, SEQ_LEN),
                             1, VOCAB, dtype=jnp.int32)
    ids = ids.at[1, 5:].set(PADDING_IDX)     # variable lengths: [8, 5]

    forward = jax.jit(ease_attention_rnn_forward)
    out = forward(ids, params)
    out = jax.block_until_ready(out)
    assert out.shape == (BATCH, NUM_LABELS)

    ref = _reference_forward(ids, params)
    if not bool(jnp.allclose(out, ref, rtol=2e-2, atol=2e-2)):
        raise AssertionError(
            f"mismatch: max abs diff {float(jnp.max(jnp.abs(out - ref)))}")
    print("KERNEL_OK")
</pallas_src>

<mosaic_0001>
module attributes {stable_mosaic.version = 11 : i64} {
  func.func @_fused_kernel(%arg0: memref<16x32xbf16, #tpu.memory_space<vmem>>, %arg1: memref<16x1xf32, #tpu.memory_space<vmem>>, %arg2: memref<16x16xf32, #tpu.memory_space<vmem>>, %arg3: memref<32x256xbf16, #tpu.memory_space<vmem>>, %arg4: memref<1x256xf32, #tpu.memory_space<vmem>>, %arg5: memref<32x128xbf16, #tpu.memory_space<vmem>>, %arg6: memref<32x128xbf16, #tpu.memory_space<vmem>>, %arg7: memref<16x64xf32, #tpu.memory_space<vmem>>, %arg8: memref<64x16xf32, #tpu.memory_space<vmem>>, %arg9: memref<1x16xf32, #tpu.memory_space<vmem>>, %arg10: memref<1x16xf32, #tpu.memory_space<vmem>>, %arg11: memref<1x1xf32, #tpu.memory_space<vmem>>, %arg12: memref<8x8xf32, #tpu.memory_space<vmem>>, %arg13: memref<2x8xf32, #tpu.memory_space<vmem>>) attributes {dimension_semantics = [], scalar_prefetch = 0 : i64, scratch_operands = 0 : i64, tpu.core_type = #tpu.core_type<tc>} {
    %c0 = arith.constant 0 : index
    %c0_0 = arith.constant 0 : index
    %0 = vector.load %arg0[%c0, %c0_0] : memref<16x32xbf16, #tpu.memory_space<vmem>>, vector<16x32xbf16>
    %c0_1 = arith.constant 0 : index
    %c0_2 = arith.constant 0 : index
    %1 = vector.load %arg1[%c0_1, %c0_2] : memref<16x1xf32, #tpu.memory_space<vmem>>, vector<16x1xf32>
    %cst = arith.constant 5.000000e-01 : f32
    %2 = vector.broadcast %cst : f32 to vector<16x1xf32>
    %3 = arith.cmpf ogt, %1, %2 : vector<16x1xf32>
    %c0_3 = arith.constant 0 : index
    %c0_4 = arith.constant 0 : index
    %4 = vector.load %arg5[%c0_3, %c0_4] : memref<32x128xbf16, #tpu.memory_space<vmem>>, vector<32x128xbf16>
    %c0_5 = arith.constant 0 : index
    %c0_6 = arith.constant 0 : index
    %5 = vector.load %arg6[%c0_5, %c0_6] : memref<32x128xbf16, #tpu.memory_space<vmem>>, vector<32x128xbf16>
    %c0_7 = arith.constant 0 : index
    %c0_8 = arith.constant 0 : index
    %6 = vector.load %arg3[%c0_7, %c0_8] : memref<32x256xbf16, #tpu.memory_space<vmem>>, vector<32x256xbf16>
    %cst_9 = arith.constant dense<0.000000e+00> : vector<16x256xf32>
    %7 = tpu.matmul %0, %6, %cst_9 {dimension_numbers = #tpu.dot_dimension_numbers<[1], [0], [0], [1], [0, 0, 1, 1], [], []>} : vector<16x32xbf16>, vector<32x256xbf16>, vector<16x256xf32> -> vector<16x256xf32>
    %c0_10 = arith.constant 0 : index
    %c0_11 = arith.constant 0 : index
    %8 = vector.load %arg4[%c0_10, %c0_11] : memref<1x256xf32, #tpu.memory_space<vmem>>, vector<1x256xf32>
    %9 = vector.broadcast %8 : vector<1x256xf32> to vector<16x256xf32>
    %10 = arith.addf %7, %9 : vector<16x256xf32>
    %11 = vector.extract_strided_slice %10 {offsets = [0, 0], sizes = [16, 128], strides = [1, 1]} : vector<16x256xf32> to vector<16x128xf32>
    %12 = vector.extract_strided_slice %10 {offsets = [0, 128], sizes = [16, 128], strides = [1, 1]} : vector<16x256xf32> to vector<16x128xf32>
    %cst_12 = arith.constant 0.000000e+00 : f32
    %13 = vector.broadcast %cst_12 : f32 to vector<2x32xf32>
    %14 = vector.extract_strided_slice %3 {offsets = [0, 0], sizes = [2, 1], strides = [1, 1]} : vector<16x1xi1> to vector<2x1xi1>
    %15 = vector.extract_strided_slice %3 {offsets = [14, 0], sizes = [2, 1], strides = [1, 1]} : vector<16x1xi1> to vector<2x1xi1>
    %16 = vector.extract_strided_slice %11 {offsets = [0, 0], sizes = [2, 128], strides = [1, 1]} : vector<16x128xf32> to vector<2x128xf32>
    %17 = arith.truncf %13 : vector<2x32xf32> to vector<2x32xbf16>
    %cst_13 = arith.constant dense<0.000000e+00> : vector<2x128xf32>
    %18 = tpu.matmul %17, %4, %cst_13 {dimension_numbers = #tpu.dot_dimension_numbers<[1], [0], [0], [1], [0, 0, 1, 1], [], []>} : vector<2x32xbf16>, vector<32x128xbf16>, vector<2x128xf32> -> vector<2x128xf32>
    %19 = arith.addf %16, %18 : vector<2x128xf32>
    %20 = vector.extract_strided_slice %19 {offsets = [0, 0], sizes = [2, 32], strides = [1, 1]} : vector<2x128xf32> to vector<2x32xf32>
    %21 = arith.negf %20 : vector<2x32xf32>
    %22 = math.exp %21 : vector<2x32xf32>
    %cst_14 = arith.constant 1.000000e+00 : f32
    %23 = vector.broadcast %cst_14 : f32 to vector<2x32xf32>
    %24 = arith.addf %23, %22 : vector<2x32xf32>
    %25 = arith.divf %23, %24 : vector<2x32xf32>
    %26 = vector.extract_strided_slice %19 {offsets = [0, 32], sizes = [2, 32], strides = [1, 1]} : vector<2x128xf32> to vector<2x32xf32>
    %27 = arith.negf %26 : vector<2x32xf32>
    %28 = math.exp %27 : vector<2x32xf32>
    %cst_15 = arith.constant 1.000000e+00 : f32
    %29 = vector.broadcast %cst_15 : f32 to vector<2x32xf32>
    %30 = arith.addf %29, %28 : vector<2x32xf32>
    %31 = arith.divf %29, %30 : vector<2x32xf32>
    %32 = vector.extract_strided_slice %19 {offsets = [0, 64], sizes = [2, 32], strides = [1, 1]} : vector<2x128xf32> to vector<2x32xf32>
    %33 = math.tanh %32 : vector<2x32xf32>
    %34 = vector.extract_strided_slice %19 {offsets = [0, 96], sizes = [2, 32], strides = [1, 1]} : vector<2x128xf32> to vector<2x32xf32>
    %35 = arith.negf %34 : vector<2x32xf32>
    %36 = math.exp %35 : vector<2x32xf32>
    %cst_16 = arith.constant 1.000000e+00 : f32
    %37 = vector.broadcast %cst_16 : f32 to vector<2x32xf32>
    %38 = arith.addf %37, %36 : vector<2x32xf32>
    %39 = arith.divf %37, %38 : vector<2x32xf32>
    %40 = arith.mulf %31, %13 : vector<2x32xf32>
    %41 = arith.mulf %25, %33 : vector<2x32xf32>
    %42 = arith.addf %40, %41 : vector<2x32xf32>
    %43 = math.tanh %42 : vector<2x32xf32>
    %44 = arith.mulf %39, %43 : vector<2x32xf32>
    %45 = vector.shape_cast %14 : vector<2x1xi1> to vector<2x1xi1>
    %46 = vector.broadcast %45 : vector<2x1xi1> to vector<2x32xi1>
    %47 = arith.select %46, %44, %13 : vector<2x32xi1>, vector<2x32xf32>
    %48 = vector.shape_cast %14 : vector<2x1xi1> to vector<2x1xi1>
    %49 = vector.broadcast %48 : vector<2x1xi1> to vector<2x32xi1>
    %50 = arith.select %49, %42, %13 : vector<2x32xi1>, vector<2x32xf32>
    %51 = vector.extract_strided_slice %12 {offsets = [14, 0], sizes = [2, 128], strides = [1, 1]} : vector<16x128xf32> to vector<2x128xf32>
    %52 = arith.truncf %13 : vector<2x32xf32> to vector<2x32xbf16>
    %cst_17 = arith.constant dense<0.000000e+00> : vector<2x128xf32>
    %53 = tpu.matmul %52, %5, %cst_17 {dimension_numbers = #tpu.dot_dimension_numbers<[1], [0], [0], [1], [0, 0, 1, 1], [], []>} : vector<2x32xbf16>, vector<32x128xbf16>, vector<2x128xf32> -> vector<2x128xf32>
    %54 = arith.addf %51, %53 : vector<2x128xf32>
    %55 = vector.extract_strided_slice %54 {offsets = [0, 0], sizes = [2, 32], strides = [1, 1]} : vector<2x128xf32> to vector<2x32xf32>
    %56 = arith.negf %55 : vector<2x32xf32>
    %57 = math.exp %56 : vector<2x32xf32>
    %cst_18 = arith.constant 1.000000e+00 : f32
    %58 = vector.broadcast %cst_18 : f32 to vector<2x32xf32>
    %59 = arith.addf %58, %57 : vector<2x32xf32>
    %60 = arith.divf %58, %59 : vector<2x32xf32>
    %61 = vector.extract_strided_slice %54 {offsets = [0, 32], sizes = [2, 32], strides = [1, 1]} : vector<2x128xf32> to vector<2x32xf32>
    %62 = arith.negf %61 : vector<2x32xf32>
    %63 = math.exp %62 : vector<2x32xf32>
    %cst_19 = arith.constant 1.000000e+00 : f32
    %64 = vector.broadcast %cst_19 : f32 to vector<2x32xf32>
    %65 = arith.addf %64, %63 : vector<2x32xf32>
    %66 = arith.divf %64, %65 : vector<2x32xf32>
    %67 = vector.extract_strided_slice %54 {offsets = [0, 64], sizes = [2, 32], strides = [1, 1]} : vector<2x128xf32> to vector<2x32xf32>
    %68 = math.tanh %67 : vector<2x32xf32>
    %69 = vector.extract_strided_slice %54 {offsets = [0, 96], sizes = [2, 32], strides = [1, 1]} : vector<2x128xf32> to vector<2x32xf32>
    %70 = arith.negf %69 : vector<2x32xf32>
    %71 = math.exp %70 : vector<2x32xf32>
    %cst_20 = arith.constant 1.000000e+00 : f32
    %72 = vector.broadcast %cst_20 : f32 to vector<2x32xf32>
    %73 = arith.addf %72, %71 : vector<2x32xf32>
    %74 = arith.divf %72, %73 : vector<2x32xf32>
    %75 = arith.mulf %66, %13 : vector<2x32xf32>
    %76 = arith.mulf %60, %68 : vector<2x32xf32>
    %77 = arith.addf %75, %76 : vector<2x32xf32>
    %78 = math.tanh %77 : vector<2x32xf32>
    %79 = arith.mulf %74, %78 : vector<2x32xf32>
    %80 = vector.shape_cast %15 : vector<2x1xi1> to vector<2x1xi1>
    %81 = vector.broadcast %80 : vector<2x1xi1> to vector<2x32xi1>
    %82 = arith.select %81, %79, %13 : vector<2x32xi1>, vector<2x32xf32>
    %83 = vector.shape_cast %15 : vector<2x1xi1> to vector<2x1xi1>
    %84 = vector.broadcast %83 : vector<2x1xi1> to vector<2x32xi1>
    %85 = arith.select %84, %77, %13 : vector<2x32xi1>, vector<2x32xf32>
    %cst_21 = arith.constant 0.000000e+00 : f32
    %86 = vector.shape_cast %14 : vector<2x1xi1> to vector<2x1xi1>
    %87 = vector.broadcast %86 : vector<2x1xi1> to vector<2x32xi1>
    %88 = vector.broadcast %cst_21 : f32 to vector<2x32xf32>
    %89 = arith.select %87, %47, %88 : vector<2x32xi1>, vector<2x32xf32>
    %cst_22 = arith.constant 0.000000e+00 : f32
    %90 = vector.shape_cast %15 : vector<2x1xi1> to vector<2x1xi1>
    %91 = vector.broadcast %90 : vector<2x1xi1> to vector<2x32xi1>
    %92 = vector.broadcast %cst_22 : f32 to vector<2x32xf32>
    %93 = arith.select %91, %82, %92 : vector<2x32xi1>, vector<2x32xf32>
    %94 = vector.extract_strided_slice %3 {offsets = [2, 0], sizes = [2, 1], strides = [1, 1]} : vector<16x1xi1> to vector<2x1xi1>
    %95 = vector.extract_strided_slice %3 {offsets = [12, 0], sizes = [2, 1], strides = [1, 1]} : vector<16x1xi1> to vector<2x1xi1>
    %96 = vector.extract_strided_slice %11 {offsets = [2, 0], sizes = [2, 128], strides = [1, 1]} : vector<16x128xf32> to vector<2x128xf32>
    %97 = arith.truncf %47 : vector<2x32xf32> to vector<2x32xbf16>
    %cst_23 = arith.constant dense<0.000000e+00> : vector<2x128xf32>
    %98 = tpu.matmul %97, %4, %cst_23 {dimension_numbers = #tpu.dot_dimension_numbers<[1], [0], [0], [1], [0, 0, 1, 1], [], []>} : vector<2x32xbf16>, vector<32x128xbf16>, vector<2x128xf32> -> vector<2x128xf32>
    %99 = arith.addf %96, %98 : vector<2x128xf32>
    %100 = vector.extract_strided_slice %99 {offsets = [0, 0], sizes = [2, 32], strides = [1, 1]} : vector<2x128xf32> to vector<2x32xf32>
    %101 = arith.negf %100 : vector<2x32xf32>
    %102 = math.exp %101 : vector<2x32xf32>
    %cst_24 = arith.constant 1.000000e+00 : f32
    %103 = vector.broadcast %cst_24 : f32 to vector<2x32xf32>
    %104 = arith.addf %103, %102 : vector<2x32xf32>
    %105 = arith.divf %103, %104 : vector<2x32xf32>
    %106 = vector.extract_strided_slice %99 {offsets = [0, 32], sizes = [2, 32], strides = [1, 1]} : vector<2x128xf32> to vector<2x32xf32>
    %107 = arith.negf %106 : vector<2x32xf32>
    %108 = math.exp %107 : vector<2x32xf32>
    %cst_25 = arith.constant 1.000000e+00 : f32
    %109 = vector.broadcast %cst_25 : f32 to vector<2x32xf32>
    %110 = arith.addf %109, %108 : vector<2x32xf32>
    %111 = arith.divf %109, %110 : vector<2x32xf32>
    %112 = vector.extract_strided_slice %99 {offsets = [0, 64], sizes = [2, 32], strides = [1, 1]} : vector<2x128xf32> to vector<2x32xf32>
    %113 = math.tanh %112 : vector<2x32xf32>
    %114 = vector.extract_strided_slice %99 {offsets = [0, 96], sizes = [2, 32], strides = [1, 1]} : vector<2x128xf32> to vector<2x32xf32>
    %115 = arith.negf %114 : vector<2x32xf32>
    %116 = math.exp %115 : vector<2x32xf32>
    %cst_26 = arith.constant 1.000000e+00 : f32
    %117 = vector.broadcast %cst_26 : f32 to vector<2x32xf32>
    %118 = arith.addf %117, %116 : vector<2x32xf32>
    %119 = arith.divf %117, %118 : vector<2x32xf32>
    %120 = arith.mulf %111, %50 : vector<2x32xf32>
    %121 = arith.mulf %105, %113 : vector<2x32xf32>
    %122 = arith.addf %120, %121 : vector<2x32xf32>
    %123 = math.tanh %122 : vector<2x32xf32>
    %124 = arith.mulf %119, %123 : vector<2x32xf32>
    %125 = vector.shape_cast %94 : vector<2x1xi1> to vector<2x1xi1>
    %126 = vector.broadcast %125 : vector<2x1xi1> to vector<2x32xi1>
    %127 = arith.select %126, %124, %47 : vector<2x32xi1>, vector<2x32xf32>
    %128 = vector.shape_cast %94 : vector<2x1xi1> to vector<2x1xi1>
    %129 = vector.broadcast %128 : vector<2x1xi1> to vector<2x32xi1>
    %130 = arith.select %129, %122, %50 : vector<2x32xi1>, vector<2x32xf32>
    %131 = vector.extract_strided_slice %12 {offsets = [12, 0], sizes = [2, 128], strides = [1, 1]} : vector<16x128xf32> to vector<2x128xf32>
    %132 = arith.truncf %82 : vector<2x32xf32> to vector<2x32xbf16>
    %cst_27 = arith.constant dense<0.000000e+00> : vector<2x128xf32>
    %133 = tpu.matmul %132, %5, %cst_27 {dimension_numbers = #tpu.dot_dimension_numbers<[1], [0], [0], [1], [0, 0, 1, 1], [], []>} : vector<2x32xbf16>, vector<32x128xbf16>, vector<2x128xf32> -> vector<2x128xf32>
    %134 = arith.addf %131, %133 : vector<2x128xf32>
    %135 = vector.extract_strided_slice %134 {offsets = [0, 0], sizes = [2, 32], strides = [1, 1]} : vector<2x128xf32> to vector<2x32xf32>
    %136 = arith.negf %135 : vector<2x32xf32>
    %137 = math.exp %136 : vector<2x32xf32>
    %cst_28 = arith.constant 1.000000e+00 : f32
    %138 = vector.broadcast %cst_28 : f32 to vector<2x32xf32>
    %139 = arith.addf %138, %137 : vector<2x32xf32>
    %140 = arith.divf %138, %139 : vector<2x32xf32>
    %141 = vector.extract_strided_slice %134 {offsets = [0, 32], sizes = [2, 32], strides = [1, 1]} : vector<2x128xf32> to vector<2x32xf32>
    %142 = arith.negf %141 : vector<2x32xf32>
    %143 = math.exp %142 : vector<2x32xf32>
    %cst_29 = arith.constant 1.000000e+00 : f32
    %144 = vector.broadcast %cst_29 : f32 to vector<2x32xf32>
    %145 = arith.addf %144, %143 : vector<2x32xf32>
    %146 = arith.divf %144, %145 : vector<2x32xf32>
    %147 = vector.extract_strided_slice %134 {offsets = [0, 64], sizes = [2, 32], strides = [1, 1]} : vector<2x128xf32> to vector<2x32xf32>
    %148 = math.tanh %147 : vector<2x32xf32>
    %149 = vector.extract_strided_slice %134 {offsets = [0, 96], sizes = [2, 32], strides = [1, 1]} : vector<2x128xf32> to vector<2x32xf32>
    %150 = arith.negf %149 : vector<2x32xf32>
    %151 = math.exp %150 : vector<2x32xf32>
    %cst_30 = arith.constant 1.000000e+00 : f32
    %152 = vector.broadcast %cst_30 : f32 to vector<2x32xf32>
    %153 = arith.addf %152, %151 : vector<2x32xf32>
    %154 = arith.divf %152, %153 : vector<2x32xf32>
    %155 = arith.mulf %146, %85 : vector<2x32xf32>
    %156 = arith.mulf %140, %148 : vector<2x32xf32>
    %157 = arith.addf %155, %156 : vector<2x32xf32>
    %158 = math.tanh %157 : vector<2x32xf32>
    %159 = arith.mulf %154, %158 : vector<2x32xf32>
    %160 = vector.shape_cast %95 : vector<2x1xi1> to vector<2x1xi1>
    %161 = vector.broadcast %160 : vector<2x1xi1> to vector<2x32xi1>
    %162 = arith.select %161, %159, %82 : vector<2x32xi1>, vector<2x32xf32>
    %163 = vector.shape_cast %95 : vector<2x1xi1> to vector<2x1xi1>
    %164 = vector.broadcast %163 : vector<2x1xi1> to vector<2x32xi1>
    %165 = arith.select %164, %157, %85 : vector<2x32xi1>, vector<2x32xf32>
    %cst_31 = arith.constant 0.000000e+00 : f32
    %166 = vector.shape_cast %94 : vector<2x1xi1> to vector<2x1xi1>
    %167 = vector.broadcast %166 : vector<2x1xi1> to vector<2x32xi1>
    %168 = vector.broadcast %cst_31 : f32 to vector<2x32xf32>
    %169 = arith.select %167, %127, %168 : vector<2x32xi1>, vector<2x32xf32>
    %cst_32 = arith.constant 0.000000e+00 : f32
    %170 = vector.shape_cast %95 : vector<2x1xi1> to vector<2x1xi1>
    %171 = vector.broadcast %170 : vector<2x1xi1> to vector<2x32xi1>
    %172 = vector.broadcast %cst_32 : f32 to vector<2x32xf32>
    %173 = arith.select %171, %162, %172 : vector<2x32xi1>, vector<2x32xf32>
    %174 = vector.extract_strided_slice %3 {offsets = [4, 0], sizes = [2, 1], strides = [1, 1]} : vector<16x1xi1> to vector<2x1xi1>
    %175 = vector.extract_strided_slice %3 {offsets = [10, 0], sizes = [2, 1], strides = [1, 1]} : vector<16x1xi1> to vector<2x1xi1>
    %176 = vector.extract_strided_slice %11 {offsets = [4, 0], sizes = [2, 128], strides = [1, 1]} : vector<16x128xf32> to vector<2x128xf32>
    %177 = arith.truncf %127 : vector<2x32xf32> to vector<2x32xbf16>
    %cst_33 = arith.constant dense<0.000000e+00> : vector<2x128xf32>
    %178 = tpu.matmul %177, %4, %cst_33 {dimension_numbers = #tpu.dot_dimension_numbers<[1], [0], [0], [1], [0, 0, 1, 1], [], []>} : vector<2x32xbf16>, vector<32x128xbf16>, vector<2x128xf32> -> vector<2x128xf32>
    %179 = arith.addf %176, %178 : vector<2x128xf32>
    %180 = vector.extract_strided_slice %179 {offsets = [0, 0], sizes = [2, 32], strides = [1, 1]} : vector<2x128xf32> to vector<2x32xf32>
    %181 = arith.negf %180 : vector<2x32xf32>
    %182 = math.exp %181 : vector<2x32xf32>
    %cst_34 = arith.constant 1.000000e+00 : f32
    %183 = vector.broadcast %cst_34 : f32 to vector<2x32xf32>
    %184 = arith.addf %183, %182 : vector<2x32xf32>
    %185 = arith.divf %183, %184 : vector<2x32xf32>
    %186 = vector.extract_strided_slice %179 {offsets = [0, 32], sizes = [2, 32], strides = [1, 1]} : vector<2x128xf32> to vector<2x32xf32>
    %187 = arith.negf %186 : vector<2x32xf32>
    %188 = math.exp %187 : vector<2x32xf32>
    %cst_35 = arith.constant 1.000000e+00 : f32
    %189 = vector.broadcast %cst_35 : f32 to vector<2x32xf32>
    %190 = arith.addf %189, %188 : vector<2x32xf32>
    %191 = arith.divf %189, %190 : vector<2x32xf32>
    %192 = vector.extract_strided_slice %179 {offsets = [0, 64], sizes = [2, 32], strides = [1, 1]} : vector<2x128xf32> to vector<2x32xf32>
    %193 = math.tanh %192 : vector<2x32xf32>
    %194 = vector.extract_strided_slice %179 {offsets = [0, 96], sizes = [2, 32], strides = [1, 1]} : vector<2x128xf32> to vector<2x32xf32>
    %195 = arith.negf %194 : vector<2x32xf32>
    %196 = math.exp %195 : vector<2x32xf32>
    %cst_36 = arith.constant 1.000000e+00 : f32
    %197 = vector.broadcast %cst_36 : f32 to vector<2x32xf32>
    %198 = arith.addf %197, %196 : vector<2x32xf32>
    %199 = arith.divf %197, %198 : vector<2x32xf32>
    %200 = arith.mulf %191, %130 : vector<2x32xf32>
    %201 = arith.mulf %185, %193 : vector<2x32xf32>
    %202 = arith.addf %200, %201 : vector<2x32xf32>
    %203 = math.tanh %202 : vector<2x32xf32>
    %204 = arith.mulf %199, %203 : vector<2x32xf32>
    %205 = vector.shape_cast %174 : vector<2x1xi1> to vector<2x1xi1>
    %206 = vector.broadcast %205 : vector<2x1xi1> to vector<2x32xi1>
    %207 = arith.select %206, %204, %127 : vector<2x32xi1>, vector<2x32xf32>
    %208 = vector.shape_cast %174 : vector<2x1xi1> to vector<2x1xi1>
    %209 = vector.broadcast %208 : vector<2x1xi1> to vector<2x32xi1>
    %210 = arith.select %209, %202, %130 : vector<2x32xi1>, vector<2x32xf32>
    %211 = vector.extract_strided_slice %12 {offsets = [10, 0], sizes = [2, 128], strides = [1, 1]} : vector<16x128xf32> to vector<2x128xf32>
    %212 = arith.truncf %162 : vector<2x32xf32> to vector<2x32xbf16>
    %cst_37 = arith.constant dense<0.000000e+00> : vector<2x128xf32>
    %213 = tpu.matmul %212, %5, %cst_37 {dimension_numbers = #tpu.dot_dimension_numbers<[1], [0], [0], [1], [0, 0, 1, 1], [], []>} : vector<2x32xbf16>, vector<32x128xbf16>, vector<2x128xf32> -> vector<2x128xf32>
    %214 = arith.addf %211, %213 : vector<2x128xf32>
    %215 = vector.extract_strided_slice %214 {offsets = [0, 0], sizes = [2, 32], strides = [1, 1]} : vector<2x128xf32> to vector<2x32xf32>
    %216 = arith.negf %215 : vector<2x32xf32>
    %217 = math.exp %216 : vector<2x32xf32>
    %cst_38 = arith.constant 1.000000e+00 : f32
    %218 = vector.broadcast %cst_38 : f32 to vector<2x32xf32>
    %219 = arith.addf %218, %217 : vector<2x32xf32>
    %220 = arith.divf %218, %219 : vector<2x32xf32>
    %221 = vector.extract_strided_slice %214 {offsets = [0, 32], sizes = [2, 32], strides = [1, 1]} : vector<2x128xf32> to vector<2x32xf32>
    %222 = arith.negf %221 : vector<2x32xf32>
    %223 = math.exp %222 : vector<2x32xf32>
    %cst_39 = arith.constant 1.000000e+00 : f32
    %224 = vector.broadcast %cst_39 : f32 to vector<2x32xf32>
    %225 = arith.addf %224, %223 : vector<2x32xf32>
    %226 = arith.divf %224, %225 : vector<2x32xf32>
    %227 = vector.extract_strided_slice %214 {offsets = [0, 64], sizes = [2, 32], strides = [1, 1]} : vector<2x128xf32> to vector<2x32xf32>
    %228 = math.tanh %227 : vector<2x32xf32>
    %229 = vector.extract_strided_slice %214 {offsets = [0, 96], sizes = [2, 32], strides = [1, 1]} : vector<2x128xf32> to vector<2x32xf32>
    %230 = arith.negf %229 : vector<2x32xf32>
    %231 = math.exp %230 : vector<2x32xf32>
    %cst_40 = arith.constant 1.000000e+00 : f32
    %232 = vector.broadcast %cst_40 : f32 to vector<2x32xf32>
    %233 = arith.addf %232, %231 : vector<2x32xf32>
    %234 = arith.divf %232, %233 : vector<2x32xf32>
    %235 = arith.mulf %226, %165 : vector<2x32xf32>
    %236 = arith.mulf %220, %228 : vector<2x32xf32>
    %237 = arith.addf %235, %236 : vector<2x32xf32>
    %238 = math.tanh %237 : vector<2x32xf32>
    %239 = arith.mulf %234, %238 : vector<2x32xf32>
    %240 = vector.shape_cast %175 : vector<2x1xi1> to vector<2x1xi1>
    %241 = vector.broadcast %240 : vector<2x1xi1> to vector<2x32xi1>
    %242 = arith.select %241, %239, %162 : vector<2x32xi1>, vector<2x32xf32>
    %243 = vector.shape_cast %175 : vector<2x1xi1> to vector<2x1xi1>
    %244 = vector.broadcast %243 : vector<2x1xi1> to vector<2x32xi1>
    %245 = arith.select %244, %237, %165 : vector<2x32xi1>, vector<2x32xf32>
    %cst_41 = arith.constant 0.000000e+00 : f32
    %246 = vector.shape_cast %174 : vector<2x1xi1> to vector<2x1xi1>
    %247 = vector.broadcast %246 : vector<2x1xi1> to vector<2x32xi1>
    %248 = vector.broadcast %cst_41 : f32 to vector<2x32xf32>
    %249 = arith.select %247, %207, %248 : vector<2x32xi1>, vector<2x32xf32>
    %cst_42 = arith.constant 0.000000e+00 : f32
    %250 = vector.shape_cast %175 : vector<2x1xi1> to vector<2x1xi1>
    %251 = vector.broadcast %250 : vector<2x1xi1> to vector<2x32xi1>
    %252 = vector.broadcast %cst_42 : f32 to vector<2x32xf32>
    %253 = arith.select %251, %242, %252 : vector<2x32xi1>, vector<2x32xf32>
    %254 = vector.extract_strided_slice %3 {offsets = [6, 0], sizes = [2, 1], strides = [1, 1]} : vector<16x1xi1> to vector<2x1xi1>
    %255 = vector.extract_strided_slice %3 {offsets = [8, 0], sizes = [2, 1], strides = [1, 1]} : vector<16x1xi1> to vector<2x1xi1>
    %256 = vector.extract_strided_slice %11 {offsets = [6, 0], sizes = [2, 128], strides = [1, 1]} : vector<16x128xf32> to vector<2x128xf32>
    %257 = arith.truncf %207 : vector<2x32xf32> to vector<2x32xbf16>
    %cst_43 = arith.constant dense<0.000000e+00> : vector<2x128xf32>
    %258 = tpu.matmul %257, %4, %cst_43 {dimension_numbers = #tpu.dot_dimension_numbers<[1], [0], [0], [1], [0, 0, 1, 1], [], []>} : vector<2x32xbf16>, vector<32x128xbf16>, vector<2x128xf32> -> vector<2x128xf32>
    %259 = arith.addf %256, %258 : vector<2x128xf32>
    %260 = vector.extract_strided_slice %259 {offsets = [0, 0], sizes = [2, 32], strides = [1, 1]} : vector<2x128xf32> to vector<2x32xf32>
    %261 = arith.negf %260 : vector<2x32xf32>
    %262 = math.exp %261 : vector<2x32xf32>
    %cst_44 = arith.constant 1.000000e+00 : f32
    %263 = vector.broadcast %cst_44 : f32 to vector<2x32xf32>
    %264 = arith.addf %263, %262 : vector<2x32xf32>
    %265 = arith.divf %263, %264 : vector<2x32xf32>
    %266 = vector.extract_strided_slice %259 {offsets = [0, 32], sizes = [2, 32], strides = [1, 1]} : vector<2x128xf32> to vector<2x32xf32>
    %267 = arith.negf %266 : vector<2x32xf32>
    %268 = math.exp %267 : vector<2x32xf32>
    %cst_45 = arith.constant 1.000000e+00 : f32
    %269 = vector.broadcast %cst_45 : f32 to vector<2x32xf32>
    %270 = arith.addf %269, %268 : vector<2x32xf32>
    %271 = arith.divf %269, %270 : vector<2x32xf32>
    %272 = vector.extract_strided_slice %259 {offsets = [0, 64], sizes = [2, 32], strides = [1, 1]} : vector<2x128xf32> to vector<2x32xf32>
    %273 = math.tanh %272 : vector<2x32xf32>
    %274 = vector.extract_strided_slice %259 {offsets = [0, 96], sizes = [2, 32], strides = [1, 1]} : vector<2x128xf32> to vector<2x32xf32>
    %275 = arith.negf %274 : vector<2x32xf32>
    %276 = math.exp %275 : vector<2x32xf32>
    %cst_46 = arith.constant 1.000000e+00 : f32
    %277 = vector.broadcast %cst_46 : f32 to vector<2x32xf32>
    %278 = arith.addf %277, %276 : vector<2x32xf32>
    %279 = arith.divf %277, %278 : vector<2x32xf32>
    %280 = arith.mulf %271, %210 : vector<2x32xf32>
    %281 = arith.mulf %265, %273 : vector<2x32xf32>
    %282 = arith.addf %280, %281 : vector<2x32xf32>
    %283 = math.tanh %282 : vector<2x32xf32>
    %284 = arith.mulf %279, %283 : vector<2x32xf32>
    %285 = vector.shape_cast %254 : vector<2x1xi1> to vector<2x1xi1>
    %286 = vector.broadcast %285 : vector<2x1xi1> to vector<2x32xi1>
    %287 = arith.select %286, %284, %207 : vector<2x32xi1>, vector<2x32xf32>
    %288 = vector.shape_cast %254 : vector<2x1xi1> to vector<2x1xi1>
    %289 = vector.broadcast %288 : vector<2x1xi1> to vector<2x32xi1>
    %290 = arith.select %289, %282, %210 : vector<2x32xi1>, vector<2x32xf32>
    %291 = vector.extract_strided_slice %12 {offsets = [8, 0], sizes = [2, 128], strides = [1, 1]} : vector<16x128xf32> to vector<2x128xf32>
    %292 = arith.truncf %242 : vector<2x32xf32> to vector<2x32xbf16>
    %cst_47 = arith.constant dense<0.000000e+00> : vector<2x128xf32>
    %293 = tpu.matmul %292, %5, %cst_47 {dimension_numbers = #tpu.dot_dimension_numbers<[1], [0], [0], [1], [0, 0, 1, 1], [], []>} : vector<2x32xbf16>, vector<32x128xbf16>, vector<2x128xf32> -> vector<2x128xf32>
    %294 = arith.addf %291, %293 : vector<2x128xf32>
    %295 = vector.extract_strided_slice %294 {offsets = [0, 0], sizes = [2, 32], strides = [1, 1]} : vector<2x128xf32> to vector<2x32xf32>
    %296 = arith.negf %295 : vector<2x32xf32>
    %297 = math.exp %296 : vector<2x32xf32>
    %cst_48 = arith.constant 1.000000e+00 : f32
    %298 = vector.broadcast %cst_48 : f32 to vector<2x32xf32>
    %299 = arith.addf %298, %297 : vector<2x32xf32>
    %300 = arith.divf %298, %299 : vector<2x32xf32>
    %301 = vector.extract_strided_slice %294 {offsets = [0, 32], sizes = [2, 32], strides = [1, 1]} : vector<2x128xf32> to vector<2x32xf32>
    %302 = arith.negf %301 : vector<2x32xf32>
    %303 = math.exp %302 : vector<2x32xf32>
    %cst_49 = arith.constant 1.000000e+00 : f32
    %304 = vector.broadcast %cst_49 : f32 to vector<2x32xf32>
    %305 = arith.addf %304, %303 : vector<2x32xf32>
    %306 = arith.divf %304, %305 : vector<2x32xf32>
    %307 = vector.extract_strided_slice %294 {offsets = [0, 64], sizes = [2, 32], strides = [1, 1]} : vector<2x128xf32> to vector<2x32xf32>
    %308 = math.tanh %307 : vector<2x32xf32>
    %309 = vector.extract_strided_slice %294 {offsets = [0, 96], sizes = [2, 32], strides = [1, 1]} : vector<2x128xf32> to vector<2x32xf32>
    %310 = arith.negf %309 : vector<2x32xf32>
    %311 = math.exp %310 : vector<2x32xf32>
    %cst_50 = arith.constant 1.000000e+00 : f32
    %312 = vector.broadcast %cst_50 : f32 to vector<2x32xf32>
    %313 = arith.addf %312, %311 : vector<2x32xf32>
    %314 = arith.divf %312, %313 : vector<2x32xf32>
    %315 = arith.mulf %306, %245 : vector<2x32xf32>
    %316 = arith.mulf %300, %308 : vector<2x32xf32>
    %317 = arith.addf %315, %316 : vector<2x32xf32>
    %318 = math.tanh %317 : vector<2x32xf32>
    %319 = arith.mulf %314, %318 : vector<2x32xf32>
    %320 = vector.shape_cast %255 : vector<2x1xi1> to vector<2x1xi1>
    %321 = vector.broadcast %320 : vector<2x1xi1> to vector<2x32xi1>
    %322 = arith.select %321, %319, %242 : vector<2x32xi1>, vector<2x32xf32>
    %323 = vector.shape_cast %255 : vector<2x1xi1> to vector<2x1xi1>
    %324 = vector.broadcast %323 : vector<2x1xi1> to vector<2x32xi1>
    %325 = arith.select %324, %317, %245 : vector<2x32xi1>, vector<2x32xf32>
    %cst_51 = arith.constant 0.000000e+00 : f32
    %326 = vector.shape_cast %254 : vector<2x1xi1> to vector<2x1xi1>
    %327 = vector.broadcast %326 : vector<2x1xi1> to vector<2x32xi1>
    %328 = vector.broadcast %cst_51 : f32 to vector<2x32xf32>
    %329 = arith.select %327, %287, %328 : vector<2x32xi1>, vector<2x32xf32>
    %cst_52 = arith.constant 0.000000e+00 : f32
    %330 = vector.shape_cast %255 : vector<2x1xi1> to vector<2x1xi1>
    %331 = vector.broadcast %330 : vector<2x1xi1> to vector<2x32xi1>
    %332 = vector.broadcast %cst_52 : f32 to vector<2x32xf32>
    %333 = arith.select %331, %322, %332 : vector<2x32xi1>, vector<2x32xf32>
    %334 = vector.extract_strided_slice %3 {offsets = [8, 0], sizes = [2, 1], strides = [1, 1]} : vector<16x1xi1> to vector<2x1xi1>
    %335 = vector.extract_strided_slice %3 {offsets = [6, 0], sizes = [2, 1], strides = [1, 1]} : vector<16x1xi1> to vector<2x1xi1>
    %336 = vector.extract_strided_slice %11 {offsets = [8, 0], sizes = [2, 128], strides = [1, 1]} : vector<16x128xf32> to vector<2x128xf32>
    %337 = arith.truncf %287 : vector<2x32xf32> to vector<2x32xbf16>
    %cst_53 = arith.constant dense<0.000000e+00> : vector<2x128xf32>
    %338 = tpu.matmul %337, %4, %cst_53 {dimension_numbers = #tpu.dot_dimension_numbers<[1], [0], [0], [1], [0, 0, 1, 1], [], []>} : vector<2x32xbf16>, vector<32x128xbf16>, vector<2x128xf32> -> vector<2x128xf32>
    %339 = arith.addf %336, %338 : vector<2x128xf32>
    %340 = vector.extract_strided_slice %339 {offsets = [0, 0], sizes = [2, 32], strides = [1, 1]} : vector<2x128xf32> to vector<2x32xf32>
    %341 = arith.negf %340 : vector<2x32xf32>
    %342 = math.exp %341 : vector<2x32xf32>
    %cst_54 = arith.constant 1.000000e+00 : f32
    %343 = vector.broadcast %cst_54 : f32 to vector<2x32xf32>
    %344 = arith.addf %343, %342 : vector<2x32xf32>
    %345 = arith.divf %343, %344 : vector<2x32xf32>
    %346 = vector.extract_strided_slice %339 {offsets = [0, 32], sizes = [2, 32], strides = [1, 1]} : vector<2x128xf32> to vector<2x32xf32>
    %347 = arith.negf %346 : vector<2x32xf32>
    %348 = math.exp %347 : vector<2x32xf32>
    %cst_55 = arith.constant 1.000000e+00 : f32
    %349 = vector.broadcast %cst_55 : f32 to vector<2x32xf32>
    %350 = arith.addf %349, %348 : vector<2x32xf32>
    %351 = arith.divf %349, %350 : vector<2x32xf32>
    %352 = vector.extract_strided_slice %339 {offsets = [0, 64], sizes = [2, 32], strides = [1, 1]} : vector<2x128xf32> to vector<2x32xf32>
    %353 = math.tanh %352 : vector<2x32xf32>
    %354 = vector.extract_strided_slice %339 {offsets = [0, 96], sizes = [2, 32], strides = [1, 1]} : vector<2x128xf32> to vector<2x32xf32>
    %355 = arith.negf %354 : vector<2x32xf32>
    %356 = math.exp %355 : vector<2x32xf32>
    %cst_56 = arith.constant 1.000000e+00 : f32
    %357 = vector.broadcast %cst_56 : f32 to vector<2x32xf32>
    %358 = arith.addf %357, %356 : vector<2x32xf32>
    %359 = arith.divf %357, %358 : vector<2x32xf32>
    %360 = arith.mulf %351, %290 : vector<2x32xf32>
    %361 = arith.mulf %345, %353 : vector<2x32xf32>
    %362 = arith.addf %360, %361 : vector<2x32xf32>
    %363 = math.tanh %362 : vector<2x32xf32>
    %364 = arith.mulf %359, %363 : vector<2x32xf32>
    %365 = vector.shape_cast %334 : vector<2x1xi1> to vector<2x1xi1>
    %366 = vector.broadcast %365 : vector<2x1xi1> to vector<2x32xi1>
    %367 = arith.select %366, %364, %287 : vector<2x32xi1>, vector<2x32xf32>
    %368 = vector.shape_cast %334 : vector<2x1xi1> to vector<2x1xi1>
    %369 = vector.broadcast %368 : vector<2x1xi1> to vector<2x32xi1>
    %370 = arith.select %369, %362, %290 : vector<2x32xi1>, vector<2x32xf32>
    %371 = vector.extract_strided_slice %12 {offsets = [6, 0], sizes = [2, 128], strides = [1, 1]} : vector<16x128xf32> to vector<2x128xf32>
    %372 = arith.truncf %322 : vector<2x32xf32> to vector<2x32xbf16>
    %cst_57 = arith.constant dense<0.000000e+00> : vector<2x128xf32>
    %373 = tpu.matmul %372, %5, %cst_57 {dimension_numbers = #tpu.dot_dimension_numbers<[1], [0], [0], [1], [0, 0, 1, 1], [], []>} : vector<2x32xbf16>, vector<32x128xbf16>, vector<2x128xf32> -> vector<2x128xf32>
    %374 = arith.addf %371, %373 : vector<2x128xf32>
    %375 = vector.extract_strided_slice %374 {offsets = [0, 0], sizes = [2, 32], strides = [1, 1]} : vector<2x128xf32> to vector<2x32xf32>
    %376 = arith.negf %375 : vector<2x32xf32>
    %377 = math.exp %376 : vector<2x32xf32>
    %cst_58 = arith.constant 1.000000e+00 : f32
    %378 = vector.broadcast %cst_58 : f32 to vector<2x32xf32>
    %379 = arith.addf %378, %377 : vector<2x32xf32>
    %380 = arith.divf %378, %379 : vector<2x32xf32>
    %381 = vector.extract_strided_slice %374 {offsets = [0, 32], sizes = [2, 32], strides = [1, 1]} : vector<2x128xf32> to vector<2x32xf32>
    %382 = arith.negf %381 : vector<2x32xf32>
    %383 = math.exp %382 : vector<2x32xf32>
    %cst_59 = arith.constant 1.000000e+00 : f32
    %384 = vector.broadcast %cst_59 : f32 to vector<2x32xf32>
    %385 = arith.addf %384, %383 : vector<2x32xf32>
    %386 = arith.divf %384, %385 : vector<2x32xf32>
    %387 = vector.extract_strided_slice %374 {offsets = [0, 64], sizes = [2, 32], strides = [1, 1]} : vector<2x128xf32> to vector<2x32xf32>
    %388 = math.tanh %387 : vector<2x32xf32>
    %389 = vector.extract_strided_slice %374 {offsets = [0, 96], sizes = [2, 32], strides = [1, 1]} : vector<2x128xf32> to vector<2x32xf32>
    %390 = arith.negf %389 : vector<2x32xf32>
    %391 = math.exp %390 : vector<2x32xf32>
    %cst_60 = arith.constant 1.000000e+00 : f32
    %392 = vector.broadcast %cst_60 : f32 to vector<2x32xf32>
    %393 = arith.addf %392, %391 : vector<2x32xf32>
    %394 = arith.divf %392, %393 : vector<2x32xf32>
    %395 = arith.mulf %386, %325 : vector<2x32xf32>
    %396 = arith.mulf %380, %388 : vector<2x32xf32>
    %397 = arith.addf %395, %396 : vector<2x32xf32>
    %398 = math.tanh %397 : vector<2x32xf32>
    %399 = arith.mulf %394, %398 : vector<2x32xf32>
    %400 = vector.shape_cast %335 : vector<2x1xi1> to vector<2x1xi1>
    %401 = vector.broadcast %400 : vector<2x1xi1> to vector<2x32xi1>
    %402 = arith.select %401, %399, %322 : vector<2x32xi1>, vector<2x32xf32>
    %403 = vector.shape_cast %335 : vector<2x1xi1> to vector<2x1xi1>
    %404 = vector.broadcast %403 : vector<2x1xi1> to vector<2x32xi1>
    %405 = arith.select %404, %397, %325 : vector<2x32xi1>, vector<2x32xf32>
    %cst_61 = arith.constant 0.000000e+00 : f32
    %406 = vector.shape_cast %334 : vector<2x1xi1> to vector<2x1xi1>
    %407 = vector.broadcast %406 : vector<2x1xi1> to vector<2x32xi1>
    %408 = vector.broadcast %cst_61 : f32 to vector<2x32xf32>
    %409 = arith.select %407, %367, %408 : vector<2x32xi1>, vector<2x32xf32>
    %cst_62 = arith.constant 0.000000e+00 : f32
    %410 = vector.shape_cast %335 : vector<2x1xi1> to vector<2x1xi1>
    %411 = vector.broadcast %410 : vector<2x1xi1> to vector<2x32xi1>
    %412 = vector.broadcast %cst_62 : f32 to vector<2x32xf32>
    %413 = arith.select %411, %402, %412 : vector<2x32xi1>, vector<2x32xf32>
    %414 = vector.extract_strided_slice %3 {offsets = [10, 0], sizes = [2, 1], strides = [1, 1]} : vector<16x1xi1> to vector<2x1xi1>
    %415 = vector.extract_strided_slice %3 {offsets = [4, 0], sizes = [2, 1], strides = [1, 1]} : vector<16x1xi1> to vector<2x1xi1>
    %416 = vector.extract_strided_slice %11 {offsets = [10, 0], sizes = [2, 128], strides = [1, 1]} : vector<16x128xf32> to vector<2x128xf32>
    %417 = arith.truncf %367 : vector<2x32xf32> to vector<2x32xbf16>
    %cst_63 = arith.constant dense<0.000000e+00> : vector<2x128xf32>
    %418 = tpu.matmul %417, %4, %cst_63 {dimension_numbers = #tpu.dot_dimension_numbers<[1], [0], [0], [1], [0, 0, 1, 1], [], []>} : vector<2x32xbf16>, vector<32x128xbf16>, vector<2x128xf32> -> vector<2x128xf32>
    %419 = arith.addf %416, %418 : vector<2x128xf32>
    %420 = vector.extract_strided_slice %419 {offsets = [0, 0], sizes = [2, 32], strides = [1, 1]} : vector<2x128xf32> to vector<2x32xf32>
    %421 = arith.negf %420 : vector<2x32xf32>
    %422 = math.exp %421 : vector<2x32xf32>
    %cst_64 = arith.constant 1.000000e+00 : f32
    %423 = vector.broadcast %cst_64 : f32 to vector<2x32xf32>
    %424 = arith.addf %423, %422 : vector<2x32xf32>
    %425 = arith.divf %423, %424 : vector<2x32xf32>
    %426 = vector.extract_strided_slice %419 {offsets = [0, 32], sizes = [2, 32], strides = [1, 1]} : vector<2x128xf32> to vector<2x32xf32>
    %427 = arith.negf %426 : vector<2x32xf32>
    %428 = math.exp %427 : vector<2x32xf32>
    %cst_65 = arith.constant 1.000000e+00 : f32
    %429 = vector.broadcast %cst_65 : f32 to vector<2x32xf32>
    %430 = arith.addf %429, %428 : vector<2x32xf32>
    %431 = arith.divf %429, %430 : vector<2x32xf32>
    %432 = vector.extract_strided_slice %419 {offsets = [0, 64], sizes = [2, 32], strides = [1, 1]} : vector<2x128xf32> to vector<2x32xf32>
    %433 = math.tanh %432 : vector<2x32xf32>
    %434 = vector.extract_strided_slice %419 {offsets = [0, 96], sizes = [2, 32], strides = [1, 1]} : vector<2x128xf32> to vector<2x32xf32>
    %435 = arith.negf %434 : vector<2x32xf32>
    %436 = math.exp %435 : vector<2x32xf32>
    %cst_66 = arith.constant 1.000000e+00 : f32
    %437 = vector.broadcast %cst_66 : f32 to vector<2x32xf32>
    %438 = arith.addf %437, %436 : vector<2x32xf32>
    %439 = arith.divf %437, %438 : vector<2x32xf32>
    %440 = arith.mulf %431, %370 : vector<2x32xf32>
    %441 = arith.mulf %425, %433 : vector<2x32xf32>
    %442 = arith.addf %440, %441 : vector<2x32xf32>
    %443 = math.tanh %442 : vector<2x32xf32>
    %444 = arith.mulf %439, %443 : vector<2x32xf32>
    %445 = vector.shape_cast %414 : vector<2x1xi1> to vector<2x1xi1>
    %446 = vector.broadcast %445 : vector<2x1xi1> to vector<2x32xi1>
    %447 = arith.select %446, %444, %367 : vector<2x32xi1>, vector<2x32xf32>
    %448 = vector.shape_cast %414 : vector<2x1xi1> to vector<2x1xi1>
    %449 = vector.broadcast %448 : vector<2x1xi1> to vector<2x32xi1>
    %450 = arith.select %449, %442, %370 : vector<2x32xi1>, vector<2x32xf32>
    %451 = vector.extract_strided_slice %12 {offsets = [4, 0], sizes = [2, 128], strides = [1, 1]} : vector<16x128xf32> to vector<2x128xf32>
    %452 = arith.truncf %402 : vector<2x32xf32> to vector<2x32xbf16>
    %cst_67 = arith.constant dense<0.000000e+00> : vector<2x128xf32>
    %453 = tpu.matmul %452, %5, %cst_67 {dimension_numbers = #tpu.dot_dimension_numbers<[1], [0], [0], [1], [0, 0, 1, 1], [], []>} : vector<2x32xbf16>, vector<32x128xbf16>, vector<2x128xf32> -> vector<2x128xf32>
    %454 = arith.addf %451, %453 : vector<2x128xf32>
    %455 = vector.extract_strided_slice %454 {offsets = [0, 0], sizes = [2, 32], strides = [1, 1]} : vector<2x128xf32> to vector<2x32xf32>
    %456 = arith.negf %455 : vector<2x32xf32>
    %457 = math.exp %456 : vector<2x32xf32>
    %cst_68 = arith.constant 1.000000e+00 : f32
    %458 = vector.broadcast %cst_68 : f32 to vector<2x32xf32>
    %459 = arith.addf %458, %457 : vector<2x32xf32>
    %460 = arith.divf %458, %459 : vector<2x32xf32>
    %461 = vector.extract_strided_slice %454 {offsets = [0, 32], sizes = [2, 32], strides = [1, 1]} : vector<2x128xf32> to vector<2x32xf32>
    %462 = arith.negf %461 : vector<2x32xf32>
    %463 = math.exp %462 : vector<2x32xf32>
    %cst_69 = arith.constant 1.000000e+00 : f32
    %464 = vector.broadcast %cst_69 : f32 to vector<2x32xf32>
    %465 = arith.addf %464, %463 : vector<2x32xf32>
    %466 = arith.divf %464, %465 : vector<2x32xf32>
    %467 = vector.extract_strided_slice %454 {offsets = [0, 64], sizes = [2, 32], strides = [1, 1]} : vector<2x128xf32> to vector<2x32xf32>
    %468 = math.tanh %467 : vector<2x32xf32>
    %469 = vector.extract_strided_slice %454 {offsets = [0, 96], sizes = [2, 32], strides = [1, 1]} : vector<2x128xf32> to vector<2x32xf32>
    %470 = arith.negf %469 : vector<2x32xf32>
    %471 = math.exp %470 : vector<2x32xf32>
    %cst_70 = arith.constant 1.000000e+00 : f32
    %472 = vector.broadcast %cst_70 : f32 to vector<2x32xf32>
    %473 = arith.addf %472, %471 : vector<2x32xf32>
    %474 = arith.divf %472, %473 : vector<2x32xf32>
    %475 = arith.mulf %466, %405 : vector<2x32xf32>
    %476 = arith.mulf %460, %468 : vector<2x32xf32>
    %477 = arith.addf %475, %476 : vector<2x32xf32>
    %478 = math.tanh %477 : vector<2x32xf32>
    %479 = arith.mulf %474, %478 : vector<2x32xf32>
    %480 = vector.shape_cast %415 : vector<2x1xi1> to vector<2x1xi1>
    %481 = vector.broadcast %480 : vector<2x1xi1> to vector<2x32xi1>
    %482 = arith.select %481, %479, %402 : vector<2x32xi1>, vector<2x32xf32>
    %483 = vector.shape_cast %415 : vector<2x1xi1> to vector<2x1xi1>
    %484 = vector.broadcast %483 : vector<2x1xi1> to vector<2x32xi1>
    %485 = arith.select %484, %477, %405 : vector<2x32xi1>, vector<2x32xf32>
    %cst_71 = arith.constant 0.000000e+00 : f32
    %486 = vector.shape_cast %414 : vector<2x1xi1> to vector<2x1xi1>
    %487 = vector.broadcast %486 : vector<2x1xi1> to vector<2x32xi1>
    %488 = vector.broadcast %cst_71 : f32 to vector<2x32xf32>
    %489 = arith.select %487, %447, %488 : vector<2x32xi1>, vector<2x32xf32>
    %cst_72 = arith.constant 0.000000e+00 : f32
    %490 = vector.shape_cast %415 : vector<2x1xi1> to vector<2x1xi1>
    %491 = vector.broadcast %490 : vector<2x1xi1> to vector<2x32xi1>
    %492 = vector.broadcast %cst_72 : f32 to vector<2x32xf32>
    %493 = arith.select %491, %482, %492 : vector<2x32xi1>, vector<2x32xf32>
    %494 = vector.extract_strided_slice %3 {offsets = [12, 0], sizes = [2, 1], strides = [1, 1]} : vector<16x1xi1> to vector<2x1xi1>
    %495 = vector.extract_strided_slice %3 {offsets = [2, 0], sizes = [2, 1], strides = [1, 1]} : vector<16x1xi1> to vector<2x1xi1>
    %496 = vector.extract_strided_slice %11 {offsets = [12, 0], sizes = [2, 128], strides = [1, 1]} : vector<16x128xf32> to vector<2x128xf32>
    %497 = arith.truncf %447 : vector<2x32xf32> to vector<2x32xbf16>
    %cst_73 = arith.constant dense<0.000000e+00> : vector<2x128xf32>
    %498 = tpu.matmul %497, %4, %cst_73 {dimension_numbers = #tpu.dot_dimension_numbers<[1], [0], [0], [1], [0, 0, 1, 1], [], []>} : vector<2x32xbf16>, vector<32x128xbf16>, vector<2x128xf32> -> vector<2x128xf32>
    %499 = arith.addf %496, %498 : vector<2x128xf32>
    %500 = vector.extract_strided_slice %499 {offsets = [0, 0], sizes = [2, 32], strides = [1, 1]} : vector<2x128xf32> to vector<2x32xf32>
    %501 = arith.negf %500 : vector<2x32xf32>
    %502 = math.exp %501 : vector<2x32xf32>
    %cst_74 = arith.constant 1.000000e+00 : f32
    %503 = vector.broadcast %cst_74 : f32 to vector<2x32xf32>
    %504 = arith.addf %503, %502 : vector<2x32xf32>
    %505 = arith.divf %503, %504 : vector<2x32xf32>
    %506 = vector.extract_strided_slice %499 {offsets = [0, 32], sizes = [2, 32], strides = [1, 1]} : vector<2x128xf32> to vector<2x32xf32>
    %507 = arith.negf %506 : vector<2x32xf32>
    %508 = math.exp %507 : vector<2x32xf32>
    %cst_75 = arith.constant 1.000000e+00 : f32
    %509 = vector.broadcast %cst_75 : f32 to vector<2x32xf32>
    %510 = arith.addf %509, %508 : vector<2x32xf32>
    %511 = arith.divf %509, %510 : vector<2x32xf32>
    %512 = vector.extract_strided_slice %499 {offsets = [0, 64], sizes = [2, 32], strides = [1, 1]} : vector<2x128xf32> to vector<2x32xf32>
    %513 = math.tanh %512 : vector<2x32xf32>
    %514 = vector.extract_strided_slice %499 {offsets = [0, 96], sizes = [2, 32], strides = [1, 1]} : vector<2x128xf32> to vector<2x32xf32>
    %515 = arith.negf %514 : vector<2x32xf32>
    %516 = math.exp %515 : vector<2x32xf32>
    %cst_76 = arith.constant 1.000000e+00 : f32
    %517 = vector.broadcast %cst_76 : f32 to vector<2x32xf32>
    %518 = arith.addf %517, %516 : vector<2x32xf32>
    %519 = arith.divf %517, %518 : vector<2x32xf32>
    %520 = arith.mulf %511, %450 : vector<2x32xf32>
    %521 = arith.mulf %505, %513 : vector<2x32xf32>
    %522 = arith.addf %520, %521 : vector<2x32xf32>
    %523 = math.tanh %522 : vector<2x32xf32>
    %524 = arith.mulf %519, %523 : vector<2x32xf32>
    %525 = vector.shape_cast %494 : vector<2x1xi1> to vector<2x1xi1>
    %526 = vector.broadcast %525 : vector<2x1xi1> to vector<2x32xi1>
    %527 = arith.select %526, %524, %447 : vector<2x32xi1>, vector<2x32xf32>
    %528 = vector.shape_cast %494 : vector<2x1xi1> to vector<2x1xi1>
    %529 = vector.broadcast %528 : vector<2x1xi1> to vector<2x32xi1>
    %530 = arith.select %529, %522, %450 : vector<2x32xi1>, vector<2x32xf32>
    %531 = vector.extract_strided_slice %12 {offsets = [2, 0], sizes = [2, 128], strides = [1, 1]} : vector<16x128xf32> to vector<2x128xf32>
    %532 = arith.truncf %482 : vector<2x32xf32> to vector<2x32xbf16>
    %cst_77 = arith.constant dense<0.000000e+00> : vector<2x128xf32>
    %533 = tpu.matmul %532, %5, %cst_77 {dimension_numbers = #tpu.dot_dimension_numbers<[1], [0], [0], [1], [0, 0, 1, 1], [], []>} : vector<2x32xbf16>, vector<32x128xbf16>, vector<2x128xf32> -> vector<2x128xf32>
    %534 = arith.addf %531, %533 : vector<2x128xf32>
    %535 = vector.extract_strided_slice %534 {offsets = [0, 0], sizes = [2, 32], strides = [1, 1]} : vector<2x128xf32> to vector<2x32xf32>
    %536 = arith.negf %535 : vector<2x32xf32>
    %537 = math.exp %536 : vector<2x32xf32>
    %cst_78 = arith.constant 1.000000e+00 : f32
    %538 = vector.broadcast %cst_78 : f32 to vector<2x32xf32>
    %539 = arith.addf %538, %537 : vector<2x32xf32>
    %540 = arith.divf %538, %539 : vector<2x32xf32>
    %541 = vector.extract_strided_slice %534 {offsets = [0, 32], sizes = [2, 32], strides = [1, 1]} : vector<2x128xf32> to vector<2x32xf32>
    %542 = arith.negf %541 : vector<2x32xf32>
    %543 = math.exp %542 : vector<2x32xf32>
    %cst_79 = arith.constant 1.000000e+00 : f32
    %544 = vector.broadcast %cst_79 : f32 to vector<2x32xf32>
    %545 = arith.addf %544, %543 : vector<2x32xf32>
    %546 = arith.divf %544, %545 : vector<2x32xf32>
    %547 = vector.extract_strided_slice %534 {offsets = [0, 64], sizes = [2, 32], strides = [1, 1]} : vector<2x128xf32> to vector<2x32xf32>
    %548 = math.tanh %547 : vector<2x32xf32>
    %549 = vector.extract_strided_slice %534 {offsets = [0, 96], sizes = [2, 32], strides = [1, 1]} : vector<2x128xf32> to vector<2x32xf32>
    %550 = arith.negf %549 : vector<2x32xf32>
    %551 = math.exp %550 : vector<2x32xf32>
    %cst_80 = arith.constant 1.000000e+00 : f32
    %552 = vector.broadcast %cst_80 : f32 to vector<2x32xf32>
    %553 = arith.addf %552, %551 : vector<2x32xf32>
    %554 = arith.divf %552, %553 : vector<2x32xf32>
    %555 = arith.mulf %546, %485 : vector<2x32xf32>
    %556 = arith.mulf %540, %548 : vector<2x32xf32>
    %557 = arith.addf %555, %556 : vector<2x32xf32>
    %558 = math.tanh %557 : vector<2x32xf32>
    %559 = arith.mulf %554, %558 : vector<2x32xf32>
    %560 = vector.shape_cast %495 : vector<2x1xi1> to vector<2x1xi1>
    %561 = vector.broadcast %560 : vector<2x1xi1> to vector<2x32xi1>
    %562 = arith.select %561, %559, %482 : vector<2x32xi1>, vector<2x32xf32>
    %563 = vector.shape_cast %495 : vector<2x1xi1> to vector<2x1xi1>
    %564 = vector.broadcast %563 : vector<2x1xi1> to vector<2x32xi1>
    %565 = arith.select %564, %557, %485 : vector<2x32xi1>, vector<2x32xf32>
    %cst_81 = arith.constant 0.000000e+00 : f32
    %566 = vector.shape_cast %494 : vector<2x1xi1> to vector<2x1xi1>
    %567 = vector.broadcast %566 : vector<2x1xi1> to vector<2x32xi1>
    %568 = vector.broadcast %cst_81 : f32 to vector<2x32xf32>
    %569 = arith.select %567, %527, %568 : vector<2x32xi1>, vector<2x32xf32>
    %cst_82 = arith.constant 0.000000e+00 : f32
    %570 = vector.shape_cast %495 : vector<2x1xi1> to vector<2x1xi1>
    %571 = vector.broadcast %570 : vector<2x1xi1> to vector<2x32xi1>
    %572 = vector.broadcast %cst_82 : f32 to vector<2x32xf32>
    %573 = arith.select %571, %562, %572 : vector<2x32xi1>, vector<2x32xf32>
    %574 = vector.extract_strided_slice %3 {offsets = [14, 0], sizes = [2, 1], strides = [1, 1]} : vector<16x1xi1> to vector<2x1xi1>
    %575 = vector.extract_strided_slice %3 {offsets = [0, 0], sizes = [2, 1], strides = [1, 1]} : vector<16x1xi1> to vector<2x1xi1>
    %576 = vector.extract_strided_slice %11 {offsets = [14, 0], sizes = [2, 128], strides = [1, 1]} : vector<16x128xf32> to vector<2x128xf32>
    %577 = arith.truncf %527 : vector<2x32xf32> to vector<2x32xbf16>
    %cst_83 = arith.constant dense<0.000000e+00> : vector<2x128xf32>
    %578 = tpu.matmul %577, %4, %cst_83 {dimension_numbers = #tpu.dot_dimension_numbers<[1], [0], [0], [1], [0, 0, 1, 1], [], []>} : vector<2x32xbf16>, vector<32x128xbf16>, vector<2x128xf32> -> vector<2x128xf32>
    %579 = arith.addf %576, %578 : vector<2x128xf32>
    %580 = vector.extract_strided_slice %579 {offsets = [0, 0], sizes = [2, 32], strides = [1, 1]} : vector<2x128xf32> to vector<2x32xf32>
    %581 = arith.negf %580 : vector<2x32xf32>
    %582 = math.exp %581 : vector<2x32xf32>
    %cst_84 = arith.constant 1.000000e+00 : f32
    %583 = vector.broadcast %cst_84 : f32 to vector<2x32xf32>
    %584 = arith.addf %583, %582 : vector<2x32xf32>
    %585 = arith.divf %583, %584 : vector<2x32xf32>
    %586 = vector.extract_strided_slice %579 {offsets = [0, 32], sizes = [2, 32], strides = [1, 1]} : vector<2x128xf32> to vector<2x32xf32>
    %587 = arith.negf %586 : vector<2x32xf32>
    %588 = math.exp %587 : vector<2x32xf32>
    %cst_85 = arith.constant 1.000000e+00 : f32
    %589 = vector.broadcast %cst_85 : f32 to vector<2x32xf32>
    %590 = arith.addf %589, %588 : vector<2x32xf32>
    %591 = arith.divf %589, %590 : vector<2x32xf32>
    %592 = vector.extract_strided_slice %579 {offsets = [0, 64], sizes = [2, 32], strides = [1, 1]} : vector<2x128xf32> to vector<2x32xf32>
    %593 = math.tanh %592 : vector<2x32xf32>
    %594 = vector.extract_strided_slice %579 {offsets = [0, 96], sizes = [2, 32], strides = [1, 1]} : vector<2x128xf32> to vector<2x32xf32>
    %595 = arith.negf %594 : vector<2x32xf32>
    %596 = math.exp %595 : vector<2x32xf32>
    %cst_86 = arith.constant 1.000000e+00 : f32
    %597 = vector.broadcast %cst_86 : f32 to vector<2x32xf32>
    %598 = arith.addf %597, %596 : vector<2x32xf32>
    %599 = arith.divf %597, %598 : vector<2x32xf32>
    %600 = arith.mulf %591, %530 : vector<2x32xf32>
    %601 = arith.mulf %585, %593 : vector<2x32xf32>
    %602 = arith.addf %600, %601 : vector<2x32xf32>
    %603 = math.tanh %602 : vector<2x32xf32>
    %604 = arith.mulf %599, %603 : vector<2x32xf32>
    %605 = vector.shape_cast %574 : vector<2x1xi1> to vector<2x1xi1>
    %606 = vector.broadcast %605 : vector<2x1xi1> to vector<2x32xi1>
    %607 = arith.select %606, %604, %527 : vector<2x32xi1>, vector<2x32xf32>
    %608 = vector.extract_strided_slice %12 {offsets = [0, 0], sizes = [2, 128], strides = [1, 1]} : vector<16x128xf32> to vector<2x128xf32>
    %609 = arith.truncf %562 : vector<2x32xf32> to vector<2x32xbf16>
    %cst_87 = arith.constant dense<0.000000e+00> : vector<2x128xf32>
    %610 = tpu.matmul %609, %5, %cst_87 {dimension_numbers = #tpu.dot_dimension_numbers<[1], [0], [0], [1], [0, 0, 1, 1], [], []>} : vector<2x32xbf16>, vector<32x128xbf16>, vector<2x128xf32> -> vector<2x128xf32>
    %611 = arith.addf %608, %610 : vector<2x128xf32>
    %612 = vector.extract_strided_slice %611 {offsets = [0, 0], sizes = [2, 32], strides = [1, 1]} : vector<2x128xf32> to vector<2x32xf32>
    %613 = arith.negf %612 : vector<2x32xf32>
    %614 = math.exp %613 : vector<2x32xf32>
    %cst_88 = arith.constant 1.000000e+00 : f32
    %615 = vector.broadcast %cst_88 : f32 to vector<2x32xf32>
    %616 = arith.addf %615, %614 : vector<2x32xf32>
    %617 = arith.divf %615, %616 : vector<2x32xf32>
    %618 = vector.extract_strided_slice %611 {offsets = [0, 32], sizes = [2, 32], strides = [1, 1]} : vector<2x128xf32> to vector<2x32xf32>
    %619 = arith.negf %618 : vector<2x32xf32>
    %620 = math.exp %619 : vector<2x32xf32>
    %cst_89 = arith.constant 1.000000e+00 : f32
    %621 = vector.broadcast %cst_89 : f32 to vector<2x32xf32>
    %622 = arith.addf %621, %620 : vector<2x32xf32>
    %623 = arith.divf %621, %622 : vector<2x32xf32>
    %624 = vector.extract_strided_slice %611 {offsets = [0, 64], sizes = [2, 32], strides = [1, 1]} : vector<2x128xf32> to vector<2x32xf32>
    %625 = math.tanh %624 : vector<2x32xf32>
    %626 = vector.extract_strided_slice %611 {offsets = [0, 96], sizes = [2, 32], strides = [1, 1]} : vector<2x128xf32> to vector<2x32xf32>
    %627 = arith.negf %626 : vector<2x32xf32>
    %628 = math.exp %627 : vector<2x32xf32>
    %cst_90 = arith.constant 1.000000e+00 : f32
    %629 = vector.broadcast %cst_90 : f32 to vector<2x32xf32>
    %630 = arith.addf %629, %628 : vector<2x32xf32>
    %631 = arith.divf %629, %630 : vector<2x32xf32>
    %632 = arith.mulf %623, %565 : vector<2x32xf32>
    %633 = arith.mulf %617, %625 : vector<2x32xf32>
    %634 = arith.addf %632, %633 : vector<2x32xf32>
    %635 = math.tanh %634 : vector<2x32xf32>
    %636 = arith.mulf %631, %635 : vector<2x32xf32>
    %637 = vector.shape_cast %575 : vector<2x1xi1> to vector<2x1xi1>
    %638 = vector.broadcast %637 : vector<2x1xi1> to vector<2x32xi1>
    %639 = arith.select %638, %636, %562 : vector<2x32xi1>, vector<2x32xf32>
    %cst_91 = arith.constant 0.000000e+00 : f32
    %640 = vector.shape_cast %574 : vector<2x1xi1> to vector<2x1xi1>
    %641 = vector.broadcast %640 : vector<2x1xi1> to vector<2x32xi1>
    %642 = vector.broadcast %cst_91 : f32 to vector<2x32xf32>
    %643 = arith.select %641, %607, %642 : vector<2x32xi1>, vector<2x32xf32>
    %cst_92 = arith.constant 0.000000e+00 : f32
    %644 = vector.shape_cast %575 : vector<2x1xi1> to vector<2x1xi1>
    %645 = vector.broadcast %644 : vector<2x1xi1> to vector<2x32xi1>
    %646 = vector.broadcast %cst_92 : f32 to vector<2x32xf32>
    %647 = arith.select %645, %639, %646 : vector<2x32xi1>, vector<2x32xf32>
    %648 = tpu.concatenate %89, %169, %249, %329, %409, %489, %569, %643 in 0 : vector<2x32xf32>, vector<2x32xf32>, vector<2x32xf32>, vector<2x32xf32>, vector<2x32xf32>, vector<2x32xf32>, vector<2x32xf32>, vector<2x32xf32> -> vector<16x32xf32>
    %649 = tpu.concatenate %647, %573, %493, %413, %333, %253, %173, %93 in 0 : vector<2x32xf32>, vector<2x32xf32>, vector<2x32xf32>, vector<2x32xf32>, vector<2x32xf32>, vector<2x32xf32>, vector<2x32xf32>, vector<2x32xf32> -> vector<16x32xf32>
    %650 = tpu.concatenate %648, %649 in 1 : vector<16x32xf32>, vector<16x32xf32> -> vector<16x64xf32>
    %c0_93 = arith.constant 0 : index
    %c0_94 = arith.constant 0 : index
    %651 = vector.load %arg7[%c0_93, %c0_94] : memref<16x64xf32, #tpu.memory_space<vmem>>, vector<16x64xf32>
    %cst_95 = arith.constant dense<0.000000e+00> : vector<16x16xf32>
    %652 = tpu.matmul %651, %650, %cst_95 {dimension_numbers = #tpu.dot_dimension_numbers<[1], [1], [0], [0], [0, 0, 1, 0], [], []>} : vector<16x64xf32>, vector<16x64xf32>, vector<16x16xf32> -> vector<16x16xf32>
    %c0_96 = arith.constant 0 : index
    %c0_97 = arith.constant 0 : index
    %653 = vector.load %arg2[%c0_96, %c0_97] : memref<16x16xf32, #tpu.memory_space<vmem>>, vector<16x16xf32>
    %cst_98 = arith.constant 5.000000e-01 : f32
    %654 = vector.broadcast %cst_98 : f32 to vector<16x16xf32>
    %655 = arith.cmpf ogt, %653, %654 : vector<16x16xf32>
    %cst_99 = arith.constant -1.000000e+30 : f32
    %656 = vector.broadcast %cst_99 : f32 to vector<16x16xf32>
    %657 = arith.select %655, %652, %656 : vector<16x16xi1>, vector<16x16xf32>
    %cst_100 = arith.constant dense<0xFF800000> : vector<16xf32>
    %658 = vector.multi_reduction <maximumf>, %657, %cst_100 [1] : vector<16x16xf32> to vector<16xf32>
    %659 = vector.shape_cast %658 : vector<16xf32> to vector<16x1xf32>
    %660 = vector.broadcast %659 : vector<16x1xf32> to vector<16x16xf32>
    %661 = arith.subf %657, %660 : vector<16x16xf32>
    %662 = math.exp %661 : vector<16x16xf32>
    %cst_101 = arith.constant dense<0.000000e+00> : vector<16xf32>
    %663 = vector.multi_reduction <add>, %662, %cst_101 [1] : vector<16x16xf32> to vector<16xf32>
    %664 = vector.shape_cast %663 : vector<16xf32> to vector<16x1xf32>
    %665 = tpu.reciprocal %664 {approx = true} : vector<16x1xf32> -> vector<16x1xf32>
    %666 = vector.broadcast %665 : vector<16x1xf32> to vector<16x16xf32>
    %667 = arith.mulf %662, %666 : vector<16x16xf32>
    %cst_102 = arith.constant dense<0.000000e+00> : vector<16x64xf32>
    %668 = tpu.matmul %667, %650, %cst_102 {dimension_numbers = #tpu.dot_dimension_numbers<[1], [0], [0], [1], [0, 0, 1, 1], [], []>} : vector<16x16xf32>, vector<16x64xf32>, vector<16x64xf32> -> vector<16x64xf32>
    %c0_103 = arith.constant 0 : index
    %c0_104 = arith.constant 0 : index
    %669 = vector.load %arg8[%c0_103, %c0_104] : memref<64x16xf32, #tpu.memory_space<vmem>>, vector<64x16xf32>
    %cst_105 = arith.constant dense<0.000000e+00> : vector<16x16xf32>
    %670 = tpu.matmul %668, %669, %cst_105 {dimension_numbers = #tpu.dot_dimension_numbers<[1], [0], [0], [1], [0, 0, 1, 1], [], []>} : vector<16x64xf32>, vector<64x16xf32>, vector<16x16xf32> -> vector<16x16xf32>
    %c0_106 = arith.constant 0 : index
    %c0_107 = arith.constant 0 : index
    %671 = vector.load %arg9[%c0_106, %c0_107] : memref<1x16xf32, #tpu.memory_space<vmem>>, vector<1x16xf32>
    %672 = vector.broadcast %671 : vector<1x16xf32> to vector<16x16xf32>
    %673 = arith.addf %670, %672 : vector<16x16xf32>
    %cst_108 = arith.constant 0.000000e+00 : f32
    %674 = vector.broadcast %cst_108 : f32 to vector<16x16xf32>
    %675 = arith.maximumf %673, %674 : vector<16x16xf32>
    %c0_109 = arith.constant 0 : index
    %c0_110 = arith.constant 0 : index
    %676 = vector.load %arg10[%c0_109, %c0_110] : memref<1x16xf32, #tpu.memory_space<vmem>>, vector<1x16xf32>
    %cst_111 = arith.constant dense<0.000000e+00> : vector<1x16xf32>
    %677 = tpu.matmul %676, %675, %cst_111 {dimension_numbers = #tpu.dot_dimension_numbers<[1], [1], [0], [0], [0, 0, 1, 0], [], []>} : vector<1x16xf32>, vector<16x16xf32>, vector<1x16xf32> -> vector<1x16xf32>
    %678 = vector.extract_strided_slice %677 {offsets = [0, 0], sizes = [1, 8], strides = [1, 1]} : vector<1x16xf32> to vector<1x8xf32>
    %679 = vector.extract_strided_slice %677 {offsets = [0, 8], sizes = [1, 8], strides = [1, 1]} : vector<1x16xf32> to vector<1x8xf32>
    %680 = tpu.concatenate %678, %679 in 0 : vector<1x8xf32>, vector<1x8xf32> -> vector<2x8xf32>
    %c0_112 = arith.constant 0 : index
    %c0_113 = arith.constant 0 : index
    %681 = vector.load %arg11[%c0_112, %c0_113] : memref<1x1xf32, #tpu.memory_space<vmem>>, vector<1x1xf32>
    %682 = vector.broadcast %681 : vector<1x1xf32> to vector<2x8xf32>
    %683 = arith.addf %680, %682 : vector<2x8xf32>
    %c0_114 = arith.constant 0 : index
    %c0_115 = arith.constant 0 : index
    %684 = vector.load %arg12[%c0_114, %c0_115] : memref<8x8xf32, #tpu.memory_space<vmem>>, vector<8x8xf32>
    %cst_116 = arith.constant dense<0.000000e+00> : vector<2x8xf32>
    %685 = tpu.matmul %683, %684, %cst_116 {dimension_numbers = #tpu.dot_dimension_numbers<[1], [0], [0], [1], [0, 0, 1, 1], [], []>} : vector<2x8xf32>, vector<8x8xf32>, vector<2x8xf32> -> vector<2x8xf32>
    %cst_117 = arith.constant 0.000000e+00 : f32
    %686 = vector.broadcast %cst_117 : f32 to vector<2x8xf32>
    %687 = arith.maximumf %685, %686 : vector<2x8xf32>
    %688 = arith.addf %687, %683 : vector<2x8xf32>
    %c0_118 = arith.constant 0 : index
    %c0_119 = arith.constant 0 : index
    %689 = vector.load %arg13[%c0_118, %c0_119] : memref<2x8xf32, #tpu.memory_space<vmem>>, vector<2x8xf32>
    tpu.vector_store %arg13[%c0_118, %c0_119], %688 {strides = array<i32>} : memref<2x8xf32, #tpu.memory_space<vmem>>, vector<2x8xf32>,
    return
  }
}

</mosaic_0001>

<llo_original>
// kernel: ease_attention_rnn_forward.1
$region0: #{ease_attention_rnn_forward.1}
  #allocation0 [shape = 'u32[]', space=smem, size = 0x4, offset = 0x4, fixed_abs, tag = 'smem constant byte address 0x4 - core index']
  #allocation1 [shape = 'u32[72,128]{1,0:T(1,128)}', space=vmem, size = 0x9000, scoped, tag = 'internal scratch']
  #allocation2 [shape = 'f32[1,1]{1,0:T(1,128)S(1)}', space=vmem, size = 0x200, scoped, tag = 'scoped memory for ease_attention_rnn_forward.1']
  %s0 = inlined_call_operand.vmem [shape: bf16[16,32], index: 0, kind: input, shape index: {}]
  %s1 = inlined_call_operand.vmem [shape: f32[16,1], index: 1, kind: input, shape index: {}]
  %s2 = inlined_call_operand.vmem [shape: f32[16,16], index: 2, kind: input, shape index: {}]
  %s3 = inlined_call_operand.vmem [shape: bf16[32,256], index: 3, kind: input, shape index: {}]
  %s4 = inlined_call_operand.vmem [shape: f32[1,256], index: 4, kind: input, shape index: {}]
  %s5 = inlined_call_operand.vmem [shape: bf16[32,128], index: 5, kind: input, shape index: {}]
  %s6 = inlined_call_operand.vmem [shape: bf16[32,128], index: 6, kind: input, shape index: {}]
  %s7 = inlined_call_operand.vmem [shape: f32[16,64], index: 7, kind: input, shape index: {}]
  %s8 = inlined_call_operand.vmem [shape: f32[64,16], index: 8, kind: input, shape index: {}]
  %s9 = inlined_call_operand.vmem [shape: f32[1,16], index: 9, kind: input, shape index: {}]
  %s10 = inlined_call_operand.vmem [shape: f32[1,16], index: 10, kind: input, shape index: {}]
  %s11 = inlined_call_operand.<no memory space> [shape: f32[1,1], index: 11, kind: input, shape index: {}]
  %s12 = inlined_call_operand.vmem [shape: f32[8,8], index: 12, kind: input, shape index: {}]
  %s13 = inlined_call_operand.hbm [shape: f32[2,8], index: 13, kind: output, shape index: {}]
  %s14 = sld [smem:[#allocation0]]
  $region62: #{ease_attention_rnn_forward.1} parent=0
    _
  %s16 = ssub.s32 1, %s14
  %s17 = scalar_select 0, %s16, %s14
  %v18 = vstv %s11
  %19 = vst [vmem:[#allocation2] sm:$0x1] %v18
  $region1: #{ease_attention_rnn_forward.1} parent=0
    #allocation3 [shape = 'u8[1024]{0}', space=vmem, size = 0x400, scoped, tag = 'output window, operand 0, single buffered']
    #allocation4 [shape = 's32[1]{0}', space=sflag, size = 0x4, scoped, tag = 'scoped memory for ease_attention_rnn_forward.1']
    %20 = vsyncpa [#allocation4], 0
    // Predicated region
    $region2: #{ease_attention_rnn_forward.1} parent=1 // pred_check
      _
    $region3: #{ease_attention_rnn_forward.1} parent=1 // pred_check_branch
      %22 = sbr.rel (0) target = $region5
    $region4: #{ease_attention_rnn_forward.1} parent=1 // pred_region
      _
    $region5: #{ease_attention_rnn_forward.1} parent=1 // pred_fallthru
      _
    // Predicated region
    $region6: #{ease_attention_rnn_forward.1} parent=1 // pred_check
      _
    $region7: #{ease_attention_rnn_forward.1} parent=1 // pred_check_branch
      %24 = sbr.rel (0) target = $region9
    $region8: #{ease_attention_rnn_forward.1} parent=1 // pred_region
      _
    $region9: #{ease_attention_rnn_forward.1} parent=1 // pred_fallthru
      _
    // Predicated region
    $region10: #{ease_attention_rnn_forward.1} parent=1 // pred_check
      _
    $region11: #{ease_attention_rnn_forward.1} parent=1 // pred_check_branch
      %26 = sbr.rel (0) target = $region13
    $region12: #{ease_attention_rnn_forward.1} parent=1 // pred_region
      _
    $region13: #{ease_attention_rnn_forward.1} parent=1 // pred_fallthru
      _
    // Predicated region
    $region14: #{ease_attention_rnn_forward.1} parent=1 // pred_check
      _
    $region15: #{ease_attention_rnn_forward.1} parent=1 // pred_check_branch
      %28 = sbr.rel (0) target = $region17
    $region16: #{ease_attention_rnn_forward.1} parent=1 // pred_region
      _
    $region17: #{ease_attention_rnn_forward.1} parent=1 // pred_fallthru
      _
    // Predicated region
    $region18: #{ease_attention_rnn_forward.1} parent=1 // pred_check
      _
    $region19: #{ease_attention_rnn_forward.1} parent=1 // pred_check_branch
      %30 = sbr.rel (0) target = $region21
    $region20: #{ease_attention_rnn_forward.1} parent=1 // pred_region
      _
    $region21: #{ease_attention_rnn_forward.1} parent=1 // pred_fallthru
      _
    // Predicated region
    $region22: #{ease_attention_rnn_forward.1} parent=1 // pred_check
      _
    $region23: #{ease_attention_rnn_forward.1} parent=1 // pred_check_branch
      %32 = sbr.rel (0) target = $region25
    $region24: #{ease_attention_rnn_forward.1} parent=1 // pred_region
      _
    $region25: #{ease_attention_rnn_forward.1} parent=1 // pred_fallthru
      _
    // Predicated region
    $region26: #{ease_attention_rnn_forward.1} parent=1 // pred_check
      _
    $region27: #{ease_attention_rnn_forward.1} parent=1 // pred_check_branch
      %34 = sbr.rel (0) target = $region29
    $region28: #{ease_attention_rnn_forward.1} parent=1 // pred_region
      _
    $region29: #{ease_attention_rnn_forward.1} parent=1 // pred_fallthru
      _
    // Predicated region
    $region30: #{ease_attention_rnn_forward.1} parent=1 // pred_check
      _
    $region31: #{ease_attention_rnn_forward.1} parent=1 // pred_check_branch
      %36 = sbr.rel (0) target = $region33
    $region32: #{ease_attention_rnn_forward.1} parent=1 // pred_region
      _
    $region33: #{ease_attention_rnn_forward.1} parent=1 // pred_fallthru
      _
    // Predicated region
    $region34: #{ease_attention_rnn_forward.1} parent=1 // pred_check
      _
    $region35: #{ease_attention_rnn_forward.1} parent=1 // pred_check_branch
      %38 = sbr.rel (0) target = $region37
    $region36: #{ease_attention_rnn_forward.1} parent=1 // pred_region
      _
    $region37: #{ease_attention_rnn_forward.1} parent=1 // pred_fallthru
      _
    // Predicated region
    $region38: #{ease_attention_rnn_forward.1} parent=1 // pred_check
      _
    $region39: #{ease_attention_rnn_forward.1} parent=1 // pred_check_branch
      %40 = sbr.rel (0) target = $region41
    $region40: #{ease_attention_rnn_forward.1} parent=1 // pred_region
      _
    $region41: #{ease_attention_rnn_forward.1} parent=1 // pred_fallthru
      _
    // Predicated region
    $region42: #{ease_attention_rnn_forward.1} parent=1 // pred_check
      _
    $region43: #{ease_attention_rnn_forward.1} parent=1 // pred_check_branch
      %42 = sbr.rel (0) target = $region45
    $region44: #{ease_attention_rnn_forward.1} parent=1 // pred_region
      _
    $region45: #{ease_attention_rnn_forward.1} parent=1 // pred_fallthru
      _
    // Predicated region
    $region46: #{ease_attention_rnn_forward.1} parent=1 // pred_check
      _
    $region47: #{ease_attention_rnn_forward.1} parent=1 // pred_check_branch
      %44 = sbr.rel (0) target = $region49
    $region48: #{ease_attention_rnn_forward.1} parent=1 // pred_region
      _
    $region49: #{ease_attention_rnn_forward.1} parent=1 // pred_fallthru
      _
    // Predicated region
    $region50: #{ease_attention_rnn_forward.1} parent=1 // pred_check
      _
    $region51: #{ease_attention_rnn_forward.1} parent=1 // pred_check_branch
      %46 = sbr.rel (0) target = $region53
    $region52: #{ease_attention_rnn_forward.1} parent=1 // pred_region
      _
    $region53: #{ease_attention_rnn_forward.1} parent=1 // pred_fallthru
      _
    %v48 = vld [vmem:[%s0] sm:$0xf]
    %v49 = vld [vmem:[%s0 + $0x4] sm:$0xf]
    %v50 = vld [vmem:[%s1] sm:$0xff]
    %v51 = vld [vmem:[%s1 + $0x8] sm:$0xff]
    %vm52 = vcmp.gt.f32.partialorder %v50, 0.5
    %vm53 = vcmp.gt.f32.partialorder %v51, 0.5
    %v54 = vld [vmem:[%s5] sm:$0xf]
    %v55 = vld [vmem:[%s5 + $0x4] sm:$0xf]
    %v56 = vld [vmem:[%s5 + $0x8] sm:$0xf]
    %v57 = vld [vmem:[%s5 + $0xc] sm:$0xf]
    %v58 = vld [vmem:[%s6] sm:$0xf]
    %v59 = vld [vmem:[%s6 + $0x4] sm:$0xf]
    %v60 = vld [vmem:[%s6 + $0x8] sm:$0xf]
    %v61 = vld [vmem:[%s6 + $0xc] sm:$0xf]
    %v62 = vld [vmem:[%s3] sm:$0xff]
    %v63 = vld [vmem:[%s3 + $0x8] sm:$0xff]
    %v64 = vld [vmem:[%s3 + $0x10] sm:$0xff]
    %v65 = vld [vmem:[%s3 + $0x18] sm:$0xff]
    %v66 = vld [vmem:[%s4] sm:$0x3]
    %v68 = vperm.slane %v66, 0
    %v69 = vperm.slane %v66, 1
    %v74 = vunpack.c.l.b16 %v48
    %v75 = vunpack.c.l.b16 %v49
    %v76 = vpack.c.b16 %v75, %v74
    %v81 = vunpack.c.l.b16 %v62
    %v82 = vunpack.c.h.b16 %v62
    %v83 = vunpack.c.l.b16 %v63
    %v84 = vunpack.c.h.b16 %v63
    %v85 = vunpack.c.l.b16 %v64
    %v86 = vunpack.c.h.b16 %v64
    %v87 = vunpack.c.l.b16 %v65
    %v88 = vunpack.c.h.b16 %v65
    %v89 = vpack.c.b16 %v83, %v81
    %v90 = vpack.c.b16 %v84, %v82
    %v91 = vpack.c.b16 %v87, %v85
    %v92 = vpack.c.b16 %v88, %v86
    %vm97 = vcmask 261120
    %v99 = vsel %vm97, %v76, 0
    %101 = vmatpush.bf16.msra.mxu0 0
    %102 = vmatpush.bf16.msra.mxu0 0
    %103 = vmatpush.bf16.msra.mxu0 0
    %104 = vmatpush.bf16.msra.mxu0 0
    %105 = vmatpush.bf16.msra.mxu0 0
    %106 = vmatpush.bf16.msra.mxu0 0
    %107 = vmatpush.bf16.msra.mxu0 %v91
    %108 = vmatpush.bf16.msra.mxu0 %v89
    %109 = vmatmul.bf16.gmra.mxu0 %v99
    %v110 = vpop.f32.mrf.mxu0
    %v111 = vadd.f32 %v68, %v110
    %v112 = vpop.f32.mrf.mxu0
    %v113 = vadd.f32 %v68, %v112
    %114 = vdwg.mxu0
    %115 = vmatpush.bf16.msra.mxu0 0
    %116 = vmatpush.bf16.msra.mxu0 0
    %117 = vmatpush.bf16.msra.mxu0 0
    %118 = vmatpush.bf16.msra.mxu0 0
    %119 = vmatpush.bf16.msra.mxu0 0
    %120 = vmatpush.bf16.msra.mxu0 0
    %121 = vmatpush.bf16.msra.mxu0 %v92
    %122 = vmatpush.bf16.msra.mxu0 %v90
    %123 = vmatmul.bf16.gmra.mxu0 %v99
    %v124 = vpop.f32.mrf.mxu0
    %v125 = vadd.f32 %v69, %v124
    %v126 = vpop.f32.mrf.mxu0
    %v127 = vadd.f32 %v69, %v126
    %128 = vdwg.mxu0
    %v133 = vunpack.c.l.b16 %v54
    %v134 = vunpack.c.l.b16 %v55
    %v135 = vunpack.c.l.b16 %v56
    %v136 = vunpack.c.l.b16 %v57
    %v137 = vpack.c.b16 %v134, %v133
    %v138 = vpack.c.b16 %v136, %v135
    %v142 = vsel %vm97, 0, 0
    %144 = vmatpush.bf16.msra.mxu0 0
    %145 = vmatpush.bf16.msra.mxu0 0
    %146 = vmatpush.bf16.msra.mxu0 0
    %147 = vmatpush.bf16.msra.mxu0 0
    %148 = vmatpush.bf16.msra.mxu0 0
    %149 = vmatpush.bf16.msra.mxu0 0
    %150 = vmatpush.bf16.msra.mxu0 %v138
    %151 = vmatpush.bf16.msra.mxu0 %v137
    %152 = vmatmul.bf16.gmra.mxu0 %v142
    %v153 = vpop.f32.mrf.mxu0
    %v154 = vadd.f32 0.0, %v153
    %v155 = vpop.f32.mrf.mxu0
    %156 = vdwg.mxu0
    %v157 = vadd.f32 %v111, %v154
    %v158 = vxor.u32 %v157, 2147483648
    %v159 = vmul.f32 %v158, 1.442695
    %v160 = vpow.pop %v159
    %v161 = vadd.f32 %v160, 1.0
    %v162 = vrcp.pop %v161
    %v163 = vmul.f32 %v161, %v162
    %v164 = vsub.f32 1.0, %v163
    %v165 = vmul.f32 %v162, %v164
    %v166 = vadd.f32 %v162, %v165
    %vm167 = vweird.f32 %v161
    %vm168 = vweird.f32 %v162
    %vm169 = vmor %vm167, %vm168
    %v170 = vsel %vm169, %v162, %v166
    %v171 = vand.u32 2147483647, %v161
    %vm172 = vcmp.eq.f32.partialorder %v171, 8.507059e+37
    %v173 = vand.u32 %v161, 2147483648
    %v174 = vor.u32 1.1754944e-38, %v173
    %v175 = vsel %vm172, %v174, %v170
    %v176 = vmul.f32 1.0, %v175
    %v177 = vtanh.pop %v157
    %v178 = vmul.f32 %v176, 0.0
    %180 = vrot.lane.b32.xlu0 %v177, 64
    %v181 = vpop.permute.xlu0 %180
    %v183 = vmul.f32 %v176, %v181
    %185 = vrot.lane.b32.xlu0 %v183, 32
    %v186 = vpop.permute.xlu0 %185
    %v188 = vadd.f32 %v178, %v186
    %v189 = vtanh.pop %v188
    %191 = vrot.lane.b32.xlu0 %v189, 64
    %v192 = vpop.permute.xlu0 %191
    %v194 = vmul.f32 %v176, %v192
    %v195 = vsel %vm52, 1, 0
    %196 = vset.pattern.permute.xlu0 0
    %197 = vperm.xlu0 %196, %v195
    %v198 = vpop.permute.xlu0 %197
    %vm199 = vcmp.eq.s32.totalorder %v198, 1
    %v200 = vsel %vm199, %v194, 0.0
    %v201 = vsel %vm199, %v188, 0.0
    %v206 = vunpack.c.l.b16 %v58
    %v207 = vunpack.c.l.b16 %v59
    %v208 = vunpack.c.l.b16 %v60
    %v209 = vunpack.c.l.b16 %v61
    %v210 = vpack.c.b16 %v207, %v206
    %v211 = vpack.c.b16 %v209, %v208
    %214 = vmatpush.bf16.msra.mxu0 0
    %215 = vmatpush.bf16.msra.mxu0 0
    %216 = vmatpush.bf16.msra.mxu0 0
    %217 = vmatpush.bf16.msra.mxu0 0
    %218 = vmatpush.bf16.msra.mxu0 0
    %219 = vmatpush.bf16.msra.mxu0 0
    %220 = vmatpush.bf16.msra.mxu0 %v211
    %221 = vmatpush.bf16.msra.mxu0 %v210
    %222 = vmatmul.bf16.gmra.mxu0 %v142
    %v223 = vpop.f32.mrf.mxu0
    %v224 = vadd.f32 0.0, %v223
    %v225 = vpop.f32.mrf.mxu0
    %226 = vdwg.mxu0
    %v228 = vrot.slane %v224, 2
    %v230 = vadd.f32 %v127, %v228
    %v231 = vxor.u32 %v230, 2147483648
    %v232 = vmul.f32 %v231, 1.442695
    %v233 = vpow.pop %v232
    %v234 = vadd.f32 %v233, 1.0
    %v235 = vrcp.pop %v234
    %v236 = vmul.f32 %v234, %v235
    %v237 = vsub.f32 1.0, %v236
    %v238 = vmul.f32 %v235, %v237
    %v239 = vadd.f32 %v235, %v238
    %vm240 = vweird.f32 %v234
    %vm241 = vweird.f32 %v235
    %vm242 = vmor %vm240, %vm241
    %v243 = vsel %vm242, %v235, %v239
    %v244 = vand.u32 2147483647, %v234
    %vm245 = vcmp.eq.f32.partialorder %v244, 8.507059e+37
    %v246 = vand.u32 %v234, 2147483648
    %v247 = vor.u32 1.1754944e-38, %v246
    %v248 = vsel %vm245, %v247, %v243
    %v249 = vmul.f32 1.0, %v248
    %v250 = vtanh.pop %v230
    %v251 = vmul.f32 %v249, 0.0
    %253 = vrot.lane.b32.xlu0 %v250, 64
    %v254 = vpop.permute.xlu0 %253
    %v256 = vmul.f32 %v249, %v254
    %258 = vrot.lane.b32.xlu0 %v256, 32
    %v259 = vpop.permute.xlu0 %258
    %v261 = vadd.f32 %v251, %v259
    %v262 = vtanh.pop %v261
    %264 = vrot.lane.b32.xlu0 %v262, 64
    %v265 = vpop.permute.xlu0 %264
    %v267 = vmul.f32 %v249, %v265
    %v268 = vsel %vm53, 1, 0
    %269 = vset.pattern.permute.xlu0 0
    %270 = vperm.xlu0 %269, %v268
    %v271 = vpop.permute.xlu0 %270
    %vm272 = vcmp.eq.s32.totalorder %v271, 1
    %v273 = vsel %vm272, %v267, 0.0
    %v274 = vsel %vm272, %v261, 0.0
    %v275 = vpack.c.bf16 %v200, %v200
    %277 = vrot.lane.b32.xlu0 %v275, 32
    %v278 = vpop.permute.xlu0 %277
    %v280 = vsel %vm97, %v278, 0
    %282 = vmatpush.bf16.msra.mxu0 0
    %283 = vmatpush.bf16.msra.mxu0 0
    %284 = vmatpush.bf16.msra.mxu0 0
    %285 = vmatpush.bf16.msra.mxu0 0
    %286 = vmatpush.bf16.msra.mxu0 0
    %287 = vmatpush.bf16.msra.mxu0 0
    %288 = vmatpush.bf16.msra.mxu0 %v138
    %289 = vmatpush.bf16.msra.mxu0 %v137
    %290 = vmatmul.bf16.gmra.mxu0 %v280
    %v291 = vpop.f32.mrf.mxu0
    %v292 = vadd.f32 0.0, %v291
    %v293 = vpop.f32.mrf.mxu0
    %294 = vdwg.mxu0
    %v296 = vrot.slane %v292, 6
    %v298 = vadd.f32 %v111, %v296
    %v299 = vxor.u32 %v298, 2147483648
    %v300 = vmul.f32 %v299, 1.442695
    %v301 = vpow.pop %v300
    %v302 = vadd.f32 %v301, 1.0
    %v303 = vrcp.pop %v302
    %v304 = vmul.f32 %v302, %v303
    %v305 = vsub.f32 1.0, %v304
    %v306 = vmul.f32 %v303, %v305
    %v307 = vadd.f32 %v303, %v306
    %vm308 = vweird.f32 %v302
    %vm309 = vweird.f32 %v303
    %vm310 = vmor %vm308, %vm309
    %v311 = vsel %vm310, %v303, %v307
    %v312 = vand.u32 2147483647, %v302
    %vm313 = vcmp.eq.f32.partialorder %v312, 8.507059e+37
    %v314 = vand.u32 %v302, 2147483648
    %v315 = vor.u32 1.1754944e-38, %v314
    %v316 = vsel %vm313, %v315, %v311
    %v317 = vmul.f32 1.0, %v316
    %v318 = vtanh.pop %v298
    %v320 = vrot.slane %v201, 6
    %v322 = vmul.f32 %v317, %v320
    %324 = vrot.lane.b32.xlu0 %v318, 64
    %v325 = vpop.permute.xlu0 %324
    %v327 = vmul.f32 %v317, %v325
    %329 = vrot.lane.b32.xlu0 %v327, 32
    %v330 = vpop.permute.xlu0 %329
    %v332 = vadd.f32 %v322, %v330
    %v333 = vtanh.pop %v332
    %335 = vrot.lane.b32.xlu0 %v333, 64
    %v336 = vpop.permute.xlu0 %335
    %v338 = vmul.f32 %v317, %v336
    %v340 = vrot.slane %v200, 6
    %v342 = vsel %vm199, %v338, %v340
    %v343 = vsel %vm199, %v332, %v320
    %v344 = vpack.c.bf16 %v273, %v273
    %v346 = vrot.slane %v344, 3
    %347 = vrot.lane.b32.xlu0 %v346, 32
    %v348 = vpop.permute.xlu0 %347
    %v350 = vsel %vm97, %v348, 0
    %352 = vmatpush.bf16.msra.mxu0 0
    %353 = vmatpush.bf16.msra.mxu0 0
    %354 = vmatpush.bf16.msra.mxu0 0
    %355 = vmatpush.bf16.msra.mxu0 0
    %356 = vmatpush.bf16.msra.mxu0 0
    %357 = vmatpush.bf16.msra.mxu0 0
    %358 = vmatpush.bf16.msra.mxu0 %v211
    %359 = vmatpush.bf16.msra.mxu0 %v210
    %360 = vmatmul.bf16.gmra.mxu0 %v350
    %v361 = vpop.f32.mrf.mxu0
    %v362 = vadd.f32 0.0, %v361
    %v363 = vpop.f32.mrf.mxu0
    %364 = vdwg.mxu0
    %v366 = vrot.slane %v362, 4
    %v368 = vadd.f32 %v127, %v366
    %v369 = vxor.u32 %v368, 2147483648
    %v370 = vmul.f32 %v369, 1.442695
    %v371 = vpow.pop %v370
    %v372 = vadd.f32 %v371, 1.0
    %v373 = vrcp.pop %v372
    %v374 = vmul.f32 %v372, %v373
    %v375 = vsub.f32 1.0, %v374
    %v376 = vmul.f32 %v373, %v375
    %v377 = vadd.f32 %v373, %v376
    %vm378 = vweird.f32 %v372
    %vm379 = vweird.f32 %v373
    %vm380 = vmor %vm378, %vm379
    %v381 = vsel %vm380, %v373, %v377
    %v382 = vand.u32 2147483647, %v372
    %vm383 = vcmp.eq.f32.partialorder %v382, 8.507059e+37
    %v384 = vand.u32 %v372, 2147483648
    %v385 = vor.u32 1.1754944e-38, %v384
    %v386 = vsel %vm383, %v385, %v381
    %v387 = vmul.f32 1.0, %v386
    %v388 = vtanh.pop %v368
    %v390 = vrot.slane %v274, 2
    %v392 = vmul.f32 %v387, %v390
    %394 = vrot.lane.b32.xlu0 %v388, 64
    %v395 = vpop.permute.xlu0 %394
    %v397 = vmul.f32 %v387, %v395
    %399 = vrot.lane.b32.xlu0 %v397, 32
    %v400 = vpop.permute.xlu0 %399
    %v402 = vadd.f32 %v392, %v400
    %v403 = vtanh.pop %v402
    %405 = vrot.lane.b32.xlu0 %v403, 64
    %v406 = vpop.permute.xlu0 %405
    %v408 = vmul.f32 %v387, %v406
    %v410 = vrot.slane %v273, 2
    %v412 = vsel %vm272, %v408, %v410
    %v413 = vsel %vm272, %v402, %v390
    %v414 = vsel %vm199, %v338, 0.0
    %v415 = vsel %vm272, %v408, 0.0
    %v416 = vpack.c.bf16 %v342, %v342
    %v418 = vrot.slane %v416, 1
    %419 = vrot.lane.b32.xlu0 %v418, 32
    %v420 = vpop.permute.xlu0 %419
    %v422 = vsel %vm97, %v420, 0
    %424 = vmatpush.bf16.msra.mxu0 0
    %425 = vmatpush.bf16.msra.mxu0 0
    %426 = vmatpush.bf16.msra.mxu0 0
    %427 = vmatpush.bf16.msra.mxu0 0
    %428 = vmatpush.bf16.msra.mxu0 0
    %429 = vmatpush.bf16.msra.mxu0 0
    %430 = vmatpush.bf16.msra.mxu0 %v138
    %431 = vmatpush.bf16.msra.mxu0 %v137
    %432 = vmatmul.bf16.gmra.mxu0 %v422
    %v433 = vpop.f32.mrf.mxu0
    %v434 = vadd.f32 0.0, %v433
    %v435 = vpop.f32.mrf.mxu0
    %436 = vdwg.mxu0
    %v438 = vrot.slane %v434, 4
    %v440 = vadd.f32 %v111, %v438
    %v441 = vxor.u32 %v440, 2147483648
    %v442 = vmul.f32 %v441, 1.442695
    %v443 = vpow.pop %v442
    %v444 = vadd.f32 %v443, 1.0
    %v445 = vrcp.pop %v444
    %v446 = vmul.f32 %v444, %v445
    %v447 = vsub.f32 1.0, %v446
    %v448 = vmul.f32 %v445, %v447
    %v449 = vadd.f32 %v445, %v448
    %vm450 = vweird.f32 %v444
    %vm451 = vweird.f32 %v445
    %vm452 = vmor %vm450, %vm451
    %v453 = vsel %vm452, %v445, %v449
    %v454 = vand.u32 2147483647, %v444
    %vm455 = vcmp.eq.f32.partialorder %v454, 8.507059e+37
    %v456 = vand.u32 %v444, 2147483648
    %v457 = vor.u32 1.1754944e-38, %v456
    %v458 = vsel %vm455, %v457, %v453
    %v459 = vmul.f32 1.0, %v458
    %v460 = vtanh.pop %v440
    %v462 = vrot.slane %v343, 6
    %v464 = vmul.f32 %v459, %v462
    %466 = vrot.lane.b32.xlu0 %v460, 64
    %v467 = vpop.permute.xlu0 %466
    %v469 = vmul.f32 %v459, %v467
    %471 = vrot.lane.b32.xlu0 %v469, 32
    %v472 = vpop.permute.xlu0 %471
    %v474 = vadd.f32 %v464, %v472
    %v475 = vtanh.pop %v474
    %477 = vrot.lane.b32.xlu0 %v475, 64
    %v478 = vpop.permute.xlu0 %477
    %v480 = vmul.f32 %v459, %v478
    %v482 = vrot.slane %v342, 6
    %v484 = vsel %vm199, %v480, %v482
    %v485 = vsel %vm199, %v474, %v462
    %v486 = vpack.c.bf16 %v412, %v412
    %v488 = vrot.slane %v486, 2
    %489 = vrot.lane.b32.xlu0 %v488, 32
    %v490 = vpop.permute.xlu0 %489
    %v492 = vsel %vm97, %v490, 0
    %494 = vmatpush.bf16.msra.mxu0 0
    %495 = vmatpush.bf16.msra.mxu0 0
    %496 = vmatpush.bf16.msra.mxu0 0
    %497 = vmatpush.bf16.msra.mxu0 0
    %498 = vmatpush.bf16.msra.mxu0 0
    %499 = vmatpush.bf16.msra.mxu0 0
    %500 = vmatpush.bf16.msra.mxu0 %v211
    %501 = vmatpush.bf16.msra.mxu0 %v210
    %502 = vmatmul.bf16.gmra.mxu0 %v492
    %v503 = vpop.f32.mrf.mxu0
    %v504 = vadd.f32 0.0, %v503
    %v505 = vpop.f32.mrf.mxu0
    %506 = vdwg.mxu0
    %v508 = vrot.slane %v504, 6
    %v510 = vadd.f32 %v127, %v508
    %v511 = vxor.u32 %v510, 2147483648
    %v512 = vmul.f32 %v511, 1.442695
    %v513 = vpow.pop %v512
    %v514 = vadd.f32 %v513, 1.0
    %v515 = vrcp.pop %v514
    %v516 = vmul.f32 %v514, %v515
    %v517 = vsub.f32 1.0, %v516
    %v518 = vmul.f32 %v515, %v517
    %v519 = vadd.f32 %v515, %v518
    %vm520 = vweird.f32 %v514
    %vm521 = vweird.f32 %v515
    %vm522 = vmor %vm520, %vm521
    %v523 = vsel %vm522, %v515, %v519
    %v524 = vand.u32 2147483647, %v514
    %vm525 = vcmp.eq.f32.partialorder %v524, 8.507059e+37
    %v526 = vand.u32 %v514, 2147483648
    %v527 = vor.u32 1.1754944e-38, %v526
    %v528 = vsel %vm525, %v527, %v523
    %v529 = vmul.f32 1.0, %v528
    %v530 = vtanh.pop %v510
    %v532 = vrot.slane %v413, 2
    %v534 = vmul.f32 %v529, %v532
    %536 = vrot.lane.b32.xlu0 %v530, 64
    %v537 = vpop.permute.xlu0 %536
    %v539 = vmul.f32 %v529, %v537
    %541 = vrot.lane.b32.xlu0 %v539, 32
    %v542 = vpop.permute.xlu0 %541
    %v544 = vadd.f32 %v534, %v542
    %v545 = vtanh.pop %v544
    %547 = vrot.lane.b32.xlu0 %v545, 64
    %v548 = vpop.permute.xlu0 %547
    %v550 = vmul.f32 %v529, %v548
    %v552 = vrot.slane %v412, 2
    %v554 = vsel %vm272, %v550, %v552
    %v555 = vsel %vm272, %v544, %v532
    %v556 = vsel %vm199, %v480, 0.0
    %v557 = vsel %vm272, %v550, 0.0
    %v558 = vpack.c.bf16 %v484, %v484
    %v560 = vrot.slane %v558, 2
    %561 = vrot.lane.b32.xlu0 %v560, 32
    %v562 = vpop.permute.xlu0 %561
    %v564 = vsel %vm97, %v562, 0
    %566 = vmatpush.bf16.msra.mxu0 0
    %567 = vmatpush.bf16.msra.mxu0 0
    %568 = vmatpush.bf16.msra.mxu0 0
    %569 = vmatpush.bf16.msra.mxu0 0
    %570 = vmatpush.bf16.msra.mxu0 0
    %571 = vmatpush.bf16.msra.mxu0 0
    %572 = vmatpush.bf16.msra.mxu0 %v138
    %573 = vmatpush.bf16.msra.mxu0 %v137
    %574 = vmatmul.bf16.gmra.mxu0 %v564
    %v575 = vpop.f32.mrf.mxu0
    %v576 = vadd.f32 0.0, %v575
    %v577 = vpop.f32.mrf.mxu0
    %578 = vdwg.mxu0
    %v580 = vrot.slane %v576, 2
    %v582 = vadd.f32 %v111, %v580
    %v583 = vxor.u32 %v582, 2147483648
    %v584 = vmul.f32 %v583, 1.442695
    %v585 = vpow.pop %v584
    %v586 = vadd.f32 %v585, 1.0
    %v587 = vrcp.pop %v586
    %v588 = vmul.f32 %v586, %v587
    %v589 = vsub.f32 1.0, %v588
    %v590 = vmul.f32 %v587, %v589
    %v591 = vadd.f32 %v587, %v590
    %vm592 = vweird.f32 %v586
    %vm593 = vweird.f32 %v587
    %vm594 = vmor %vm592, %vm593
    %v595 = vsel %vm594, %v587, %v591
    %v596 = vand.u32 2147483647, %v586
    %vm597 = vcmp.eq.f32.partialorder %v596, 8.507059e+37
    %v598 = vand.u32 %v586, 2147483648
    %v599 = vor.u32 1.1754944e-38, %v598
    %v600 = vsel %vm597, %v599, %v595
    %v601 = vmul.f32 1.0, %v600
    %v602 = vtanh.pop %v582
    %v604 = vrot.slane %v485, 6
    %v606 = vmul.f32 %v601, %v604
    %608 = vrot.lane.b32.xlu0 %v602, 64
    %v609 = vpop.permute.xlu0 %608
    %v611 = vmul.f32 %v601, %v609
    %613 = vrot.lane.b32.xlu0 %v611, 32
    %v614 = vpop.permute.xlu0 %613
    %v616 = vadd.f32 %v606, %v614
    %v617 = vtanh.pop %v616
    %619 = vrot.lane.b32.xlu0 %v617, 64
    %v620 = vpop.permute.xlu0 %619
    %v622 = vmul.f32 %v601, %v620
    %v624 = vrot.slane %v484, 6
    %v626 = vsel %vm199, %v622, %v624
    %v627 = vsel %vm199, %v616, %v604
    %v628 = vpack.c.bf16 %v554, %v554
    %v630 = vrot.slane %v628, 1
    %631 = vrot.lane.b32.xlu0 %v630, 32
    %v632 = vpop.permute.xlu0 %631
    %v634 = vsel %vm97, %v632, 0
    %636 = vmatpush.bf16.msra.mxu0 0
    %637 = vmatpush.bf16.msra.mxu0 0
    %638 = vmatpush.bf16.msra.mxu0 0
    %639 = vmatpush.bf16.msra.mxu0 0
    %640 = vmatpush.bf16.msra.mxu0 0
    %641 = vmatpush.bf16.msra.mxu0 0
    %642 = vmatpush.bf16.msra.mxu0 %v211
    %643 = vmatpush.bf16.msra.mxu0 %v210
    %644 = vmatmul.bf16.gmra.mxu0 %v634
    %v645 = vpop.f32.mrf.mxu0
    %v646 = vadd.f32 0.0, %v645
    %v647 = vpop.f32.mrf.mxu0
    %648 = vdwg.mxu0
    %v649 = vadd.f32 %v127, %v646
    %v650 = vxor.u32 %v649, 2147483648
    %v651 = vmul.f32 %v650, 1.442695
    %v652 = vpow.pop %v651
    %v653 = vadd.f32 %v652, 1.0
    %v654 = vrcp.pop %v653
    %v655 = vmul.f32 %v653, %v654
    %v656 = vsub.f32 1.0, %v655
    %v657 = vmul.f32 %v654, %v656
    %v658 = vadd.f32 %v654, %v657
    %vm659 = vweird.f32 %v653
    %vm660 = vweird.f32 %v654
    %vm661 = vmor %vm659, %vm660
    %v662 = vsel %vm661, %v654, %v658
    %v663 = vand.u32 2147483647, %v653
    %vm664 = vcmp.eq.f32.partialorder %v663, 8.507059e+37
    %v665 = vand.u32 %v653, 2147483648
    %v666 = vor.u32 1.1754944e-38, %v665
    %v667 = vsel %vm664, %v666, %v662
    %v668 = vmul.f32 1.0, %v667
    %v669 = vtanh.pop %v649
    %v671 = vrot.slane %v555, 2
    %v673 = vmul.f32 %v668, %v671
    %675 = vrot.lane.b32.xlu0 %v669, 64
    %v676 = vpop.permute.xlu0 %675
    %v678 = vmul.f32 %v668, %v676
    %680 = vrot.lane.b32.xlu0 %v678, 32
    %v681 = vpop.permute.xlu0 %680
    %v683 = vadd.f32 %v673, %v681
    %v684 = vtanh.pop %v683
    %686 = vrot.lane.b32.xlu0 %v684, 64
    %v687 = vpop.permute.xlu0 %686
    %v689 = vmul.f32 %v668, %v687
    %v691 = vrot.slane %v554, 2
    %v693 = vsel %vm272, %v689, %v691
    %v694 = vsel %vm272, %v683, %v671
    %v695 = vsel %vm199, %v622, 0.0
    %v696 = vsel %vm272, %v689, 0.0
    %v697 = vpack.c.bf16 %v626, %v626
    %v699 = vrot.slane %v697, 3
    %700 = vrot.lane.b32.xlu0 %v699, 32
    %v701 = vpop.permute.xlu0 %700
    %v703 = vsel %vm97, %v701, 0
    %705 = vmatpush.bf16.msra.mxu0 0
    %706 = vmatpush.bf16.msra.mxu0 0
    %707 = vmatpush.bf16.msra.mxu0 0
    %708 = vmatpush.bf16.msra.mxu0 0
    %709 = vmatpush.bf16.msra.mxu0 0
    %710 = vmatpush.bf16.msra.mxu0 0
    %711 = vmatpush.bf16.msra.mxu0 %v138
    %712 = vmatpush.bf16.msra.mxu0 %v137
    %713 = vmatmul.bf16.gmra.mxu0 %v703
    %v714 = vpop.f32.mrf.mxu0
    %v715 = vadd.f32 0.0, %v714
    %v716 = vpop.f32.mrf.mxu0
    %717 = vdwg.mxu0
    %v718 = vadd.f32 %v113, %v715
    %v719 = vxor.u32 %v718, 2147483648
    %v720 = vmul.f32 %v719, 1.442695
    %v721 = vpow.pop %v720
    %v722 = vadd.f32 %v721, 1.0
    %v723 = vrcp.pop %v722
    %v724 = vmul.f32 %v722, %v723
    %v725 = vsub.f32 1.0, %v724
    %v726 = vmul.f32 %v723, %v725
    %v727 = vadd.f32 %v723, %v726
    %vm728 = vweird.f32 %v722
    %vm729 = vweird.f32 %v723
    %vm730 = vmor %vm728, %vm729
    %v731 = vsel %vm730, %v723, %v727
    %v732 = vand.u32 2147483647, %v722
    %vm733 = vcmp.eq.f32.partialorder %v732, 8.507059e+37
    %v734 = vand.u32 %v722, 2147483648
    %v735 = vor.u32 1.1754944e-38, %v734
    %v736 = vsel %vm733, %v735, %v731
    %v737 = vmul.f32 1.0, %v736
    %v738 = vtanh.pop %v718
    %v740 = vrot.slane %v627, 6
    %v742 = vmul.f32 %v737, %v740
    %744 = vrot.lane.b32.xlu0 %v738, 64
    %v745 = vpop.permute.xlu0 %744
    %v747 = vmul.f32 %v737, %v745
    %749 = vrot.lane.b32.xlu0 %v747, 32
    %v750 = vpop.permute.xlu0 %749
    %v752 = vadd.f32 %v742, %v750
    %v753 = vtanh.pop %v752
    %755 = vrot.lane.b32.xlu0 %v753, 64
    %v756 = vpop.permute.xlu0 %755
    %v758 = vmul.f32 %v737, %v756
    %v760 = vrot.slane %v626, 6
    %v762 = vsel %vm272, %v758, %v760
    %v763 = vsel %vm272, %v752, %v740
    %v764 = vpack.c.bf16 %v693, %v693
    %766 = vrot.lane.b32.xlu0 %v764, 32
    %v767 = vpop.permute.xlu0 %766
    %v769 = vsel %vm97, %v767, 0
    %771 = vmatpush.bf16.msra.mxu0 0
    %772 = vmatpush.bf16.msra.mxu0 0
    %773 = vmatpush.bf16.msra.mxu0 0
    %774 = vmatpush.bf16.msra.mxu0 0
    %775 = vmatpush.bf16.msra.mxu0 0
    %776 = vmatpush.bf16.msra.mxu0 0
    %777 = vmatpush.bf16.msra.mxu0 %v211
    %778 = vmatpush.bf16.msra.mxu0 %v210
    %779 = vmatmul.bf16.gmra.mxu0 %v769
    %v780 = vpop.f32.mrf.mxu0
    %v781 = vadd.f32 0.0, %v780
    %v782 = vpop.f32.mrf.mxu0
    %783 = vdwg.mxu0
    %v785 = vrot.slane %v781, 2
    %v787 = vadd.f32 %v125, %v785
    %v788 = vxor.u32 %v787, 2147483648
    %v789 = vmul.f32 %v788, 1.442695
    %v790 = vpow.pop %v789
    %v791 = vadd.f32 %v790, 1.0
    %v792 = vrcp.pop %v791
    %v793 = vmul.f32 %v791, %v792
    %v794 = vsub.f32 1.0, %v793
    %v795 = vmul.f32 %v792, %v794
    %v796 = vadd.f32 %v792, %v795
    %vm797 = vweird.f32 %v791
    %vm798 = vweird.f32 %v792
    %vm799 = vmor %vm797, %vm798
    %v800 = vsel %vm799, %v792, %v796
    %v801 = vand.u32 2147483647, %v791
    %vm802 = vcmp.eq.f32.partialorder %v801, 8.507059e+37
    %v803 = vand.u32 %v791, 2147483648
    %v804 = vor.u32 1.1754944e-38, %v803
    %v805 = vsel %vm802, %v804, %v800
    %v806 = vmul.f32 1.0, %v805
    %v807 = vtanh.pop %v787
    %v809 = vrot.slane %v694, 2
    %v811 = vmul.f32 %v806, %v809
    %813 = vrot.lane.b32.xlu0 %v807, 64
    %v814 = vpop.permute.xlu0 %813
    %v816 = vmul.f32 %v806, %v814
    %818 = vrot.lane.b32.xlu0 %v816, 32
    %v819 = vpop.permute.xlu0 %818
    %v821 = vadd.f32 %v811, %v819
    %v822 = vtanh.pop %v821
    %824 = vrot.lane.b32.xlu0 %v822, 64
    %v825 = vpop.permute.xlu0 %824
    %v827 = vmul.f32 %v806, %v825
    %v829 = vrot.slane %v693, 2
    %v831 = vsel %vm199, %v827, %v829
    %v832 = vsel %vm199, %v821, %v809
    %v833 = vsel %vm272, %v758, 0.0
    %v834 = vsel %vm199, %v827, 0.0
    %v835 = vpack.c.bf16 %v762, %v762
    %837 = vrot.lane.b32.xlu0 %v835, 32
    %v838 = vpop.permute.xlu0 %837
    %v840 = vsel %vm97, %v838, 0
    %842 = vmatpush.bf16.msra.mxu0 0
    %843 = vmatpush.bf16.msra.mxu0 0
    %844 = vmatpush.bf16.msra.mxu0 0
    %845 = vmatpush.bf16.msra.mxu0 0
    %846 = vmatpush.bf16.msra.mxu0 0
    %847 = vmatpush.bf16.msra.mxu0 0
    %848 = vmatpush.bf16.msra.mxu0 %v138
    %849 = vmatpush.bf16.msra.mxu0 %v137
    %850 = vmatmul.bf16.gmra.mxu0 %v840
    %v851 = vpop.f32.mrf.mxu0
    %v852 = vadd.f32 0.0, %v851
    %v853 = vpop.f32.mrf.mxu0
    %854 = vdwg.mxu0
    %v856 = vrot.slane %v852, 6
    %v858 = vadd.f32 %v113, %v856
    %v859 = vxor.u32 %v858, 2147483648
    %v860 = vmul.f32 %v859, 1.442695
    %v861 = vpow.pop %v860
    %v862 = vadd.f32 %v861, 1.0
    %v863 = vrcp.pop %v862
    %v864 = vmul.f32 %v862, %v863
    %v865 = vsub.f32 1.0, %v864
    %v866 = vmul.f32 %v863, %v865
    %v867 = vadd.f32 %v863, %v866
    %vm868 = vweird.f32 %v862
    %vm869 = vweird.f32 %v863
    %vm870 = vmor %vm868, %vm869
    %v871 = vsel %vm870, %v863, %v867
    %v872 = vand.u32 2147483647, %v862
    %vm873 = vcmp.eq.f32.partialorder %v872, 8.507059e+37
    %v874 = vand.u32 %v862, 2147483648
    %v875 = vor.u32 1.1754944e-38, %v874
    %v876 = vsel %vm873, %v875, %v871
    %v877 = vmul.f32 1.0, %v876
    %v878 = vtanh.pop %v858
    %v880 = vrot.slane %v763, 6
    %v882 = vmul.f32 %v877, %v880
    %884 = vrot.lane.b32.xlu0 %v878, 64
    %v885 = vpop.permute.xlu0 %884
    %v887 = vmul.f32 %v877, %v885
    %889 = vrot.lane.b32.xlu0 %v887, 32
    %v890 = vpop.permute.xlu0 %889
    %v892 = vadd.f32 %v882, %v890
    %v893 = vtanh.pop %v892
    %895 = vrot.lane.b32.xlu0 %v893, 64
    %v896 = vpop.permute.xlu0 %895
    %v898 = vmul.f32 %v877, %v896
    %v900 = vrot.slane %v762, 6
    %v902 = vsel %vm272, %v898, %v900
    %v903 = vsel %vm272, %v892, %v880
    %v904 = vpack.c.bf16 %v831, %v831
    %v906 = vrot.slane %v904, 3
    %907 = vrot.lane.b32.xlu0 %v906, 32
    %v908 = vpop.permute.xlu0 %907
    %v910 = vsel %vm97, %v908, 0
    %912 = vmatpush.bf16.msra.mxu0 0
    %913 = vmatpush.bf16.msra.mxu0 0
    %914 = vmatpush.bf16.msra.mxu0 0
    %915 = vmatpush.bf16.msra.mxu0 0
    %916 = vmatpush.bf16.msra.mxu0 0
    %917 = vmatpush.bf16.msra.mxu0 0
    %918 = vmatpush.bf16.msra.mxu0 %v211
    %919 = vmatpush.bf16.msra.mxu0 %v210
    %920 = vmatmul.bf16.gmra.mxu0 %v910
    %v921 = vpop.f32.mrf.mxu0
    %v922 = vadd.f32 0.0, %v921
    %v923 = vpop.f32.mrf.mxu0
    %924 = vdwg.mxu0
    %v926 = vrot.slane %v922, 4
    %v928 = vadd.f32 %v125, %v926
    %v929 = vxor.u32 %v928, 2147483648
    %v930 = vmul.f32 %v929, 1.442695
    %v931 = vpow.pop %v930
    %v932 = vadd.f32 %v931, 1.0
    %v933 = vrcp.pop %v932
    %v934 = vmul.f32 %v932, %v933
    %v935 = vsub.f32 1.0, %v934
    %v936 = vmul.f32 %v933, %v935
    %v937 = vadd.f32 %v933, %v936
    %vm938 = vweird.f32 %v932
    %vm939 = vweird.f32 %v933
    %vm940 = vmor %vm938, %vm939
    %v941 = vsel %vm940, %v933, %v937
    %v942 = vand.u32 2147483647, %v932
    %vm943 = vcmp.eq.f32.partialorder %v942, 8.507059e+37
    %v944 = vand.u32 %v932, 2147483648
    %v945 = vor.u32 1.1754944e-38, %v944
    %v946 = vsel %vm943, %v945, %v941
    %v947 = vmul.f32 1.0, %v946
    %v948 = vtanh.pop %v928
    %v950 = vrot.slane %v832, 2
    %v952 = vmul.f32 %v947, %v950
    %954 = vrot.lane.b32.xlu0 %v948, 64
    %v955 = vpop.permute.xlu0 %954
    %v957 = vmul.f32 %v947, %v955
    %959 = vrot.lane.b32.xlu0 %v957, 32
    %v960 = vpop.permute.xlu0 %959
    %v962 = vadd.f32 %v952, %v960
    %v963 = vtanh.pop %v962
    %965 = vrot.lane.b32.xlu0 %v963, 64
    %v966 = vpop.permute.xlu0 %965
    %v968 = vmul.f32 %v947, %v966
    %v970 = vrot.slane %v831, 2
    %v972 = vsel %vm199, %v968, %v970
    %v973 = vsel %vm199, %v962, %v950
    %v974 = vsel %vm272, %v898, 0.0
    %v975 = vsel %vm199, %v968, 0.0
    %v976 = vpack.c.bf16 %v902, %v902
    %v978 = vrot.slane %v976, 1
    %979 = vrot.lane.b32.xlu0 %v978, 32
    %v980 = vpop.permute.xlu0 %979
    %v982 = vsel %vm97, %v980, 0
    %984 = vmatpush.bf16.msra.mxu0 0
    %985 = vmatpush.bf16.msra.mxu0 0
    %986 = vmatpush.bf16.msra.mxu0 0
    %987 = vmatpush.bf16.msra.mxu0 0
    %988 = vmatpush.bf16.msra.mxu0 0
    %989 = vmatpush.bf16.msra.mxu0 0
    %990 = vmatpush.bf16.msra.mxu0 %v138
    %991 = vmatpush.bf16.msra.mxu0 %v137
    %992 = vmatmul.bf16.gmra.mxu0 %v982
    %v993 = vpop.f32.mrf.mxu0
    %v994 = vadd.f32 0.0, %v993
    %v995 = vpop.f32.mrf.mxu0
    %996 = vdwg.mxu0
    %v998 = vrot.slane %v994, 4
    %v1000 = vadd.f32 %v113, %v998
    %v1001 = vxor.u32 %v1000, 2147483648
    %v1002 = vmul.f32 %v1001, 1.442695
    %v1003 = vpow.pop %v1002
    %v1004 = vadd.f32 %v1003, 1.0
    %v1005 = vrcp.pop %v1004
    %v1006 = vmul.f32 %v1004, %v1005
    %v1007 = vsub.f32 1.0, %v1006
    %v1008 = vmul.f32 %v1005, %v1007
    %v1009 = vadd.f32 %v1005, %v1008
    %vm1010 = vweird.f32 %v1004
    %vm1011 = vweird.f32 %v1005
    %vm1012 = vmor %vm1010, %vm1011
    %v1013 = vsel %vm1012, %v1005, %v1009
    %v1014 = vand.u32 2147483647, %v1004
    %vm1015 = vcmp.eq.f32.partialorder %v1014, 8.507059e+37
    %v1016 = vand.u32 %v1004, 2147483648
    %v1017 = vor.u32 1.1754944e-38, %v1016
    %v1018 = vsel %vm1015, %v1017, %v1013
    %v1019 = vmul.f32 1.0, %v1018
    %v1020 = vtanh.pop %v1000
    %v1022 = vrot.slane %v903, 6
    %v1024 = vmul.f32 %v1019, %v1022
    %1026 = vrot.lane.b32.xlu0 %v1020, 64
    %v1027 = vpop.permute.xlu0 %1026
    %v1029 = vmul.f32 %v1019, %v1027
    %1031 = vrot.lane.b32.xlu0 %v1029, 32
    %v1032 = vpop.permute.xlu0 %1031
    %v1034 = vadd.f32 %v1024, %v1032
    %v1035 = vtanh.pop %v1034
    %1037 = vrot.lane.b32.xlu0 %v1035, 64
    %v1038 = vpop.permute.xlu0 %1037
    %v1040 = vmul.f32 %v1019, %v1038
    %v1042 = vrot.slane %v902, 6
    %v1044 = vsel %vm272, %v1040, %v1042
    %v1045 = vsel %vm272, %v1034, %v1022
    %v1046 = vpack.c.bf16 %v972, %v972
    %v1048 = vrot.slane %v1046, 2
    %1049 = vrot.lane.b32.xlu0 %v1048, 32
    %v1050 = vpop.permute.xlu0 %1049
    %v1052 = vsel %vm97, %v1050, 0
    %1054 = vmatpush.bf16.msra.mxu0 0
    %1055 = vmatpush.bf16.msra.mxu0 0
    %1056 = vmatpush.bf16.msra.mxu0 0
    %1057 = vmatpush.bf16.msra.mxu0 0
    %1058 = vmatpush.bf16.msra.mxu0 0
    %1059 = vmatpush.bf16.msra.mxu0 0
    %1060 = vmatpush.bf16.msra.mxu0 %v211
    %1061 = vmatpush.bf16.msra.mxu0 %v210
    %1062 = vmatmul.bf16.gmra.mxu0 %v1052
    %v1063 = vpop.f32.mrf.mxu0
    %v1064 = vadd.f32 0.0, %v1063
    %v1065 = vpop.f32.mrf.mxu0
    %1066 = vdwg.mxu0
    %v1068 = vrot.slane %v1064, 6
    %v1070 = vadd.f32 %v125, %v1068
    %v1071 = vxor.u32 %v1070, 2147483648
    %v1072 = vmul.f32 %v1071, 1.442695
    %v1073 = vpow.pop %v1072
    %v1074 = vadd.f32 %v1073, 1.0
    %v1075 = vrcp.pop %v1074
    %v1076 = vmul.f32 %v1074, %v1075
    %v1077 = vsub.f32 1.0, %v1076
    %v1078 = vmul.f32 %v1075, %v1077
    %v1079 = vadd.f32 %v1075, %v1078
    %vm1080 = vweird.f32 %v1074
    %vm1081 = vweird.f32 %v1075
    %vm1082 = vmor %vm1080, %vm1081
    %v1083 = vsel %vm1082, %v1075, %v1079
    %v1084 = vand.u32 2147483647, %v1074
    %vm1085 = vcmp.eq.f32.partialorder %v1084, 8.507059e+37
    %v1086 = vand.u32 %v1074, 2147483648
    %v1087 = vor.u32 1.1754944e-38, %v1086
    %v1088 = vsel %vm1085, %v1087, %v1083
    %v1089 = vmul.f32 1.0, %v1088
    %v1090 = vtanh.pop %v1070
    %v1092 = vrot.slane %v973, 2
    %v1094 = vmul.f32 %v1089, %v1092
    %1096 = vrot.lane.b32.xlu0 %v1090, 64
    %v1097 = vpop.permute.xlu0 %1096
    %v1099 = vmul.f32 %v1089, %v1097
    %1101 = vrot.lane.b32.xlu0 %v1099, 32
    %v1102 = vpop.permute.xlu0 %1101
    %v1104 = vadd.f32 %v1094, %v1102
    %v1105 = vtanh.pop %v1104
    %1107 = vrot.lane.b32.xlu0 %v1105, 64
    %v1108 = vpop.permute.xlu0 %1107
    %v1110 = vmul.f32 %v1089, %v1108
    %v1112 = vrot.slane %v972, 2
    %v1114 = vsel %vm199, %v1110, %v1112
    %v1115 = vsel %vm199, %v1104, %v1092
    %v1116 = vsel %vm272, %v1040, 0.0
    %v1117 = vsel %vm199, %v1110, 0.0
    %v1118 = vpack.c.bf16 %v1044, %v1044
    %v1120 = vrot.slane %v1118, 2
    %1121 = vrot.lane.b32.xlu0 %v1120, 32
    %v1122 = vpop.permute.xlu0 %1121
    %v1124 = vsel %vm97, %v1122, 0
    %1126 = vmatpush.bf16.msra.mxu0 0
    %1127 = vmatpush.bf16.msra.mxu0 0
    %1128 = vmatpush.bf16.msra.mxu0 0
    %1129 = vmatpush.bf16.msra.mxu0 0
    %1130 = vmatpush.bf16.msra.mxu0 0
    %1131 = vmatpush.bf16.msra.mxu0 0
    %1132 = vmatpush.bf16.msra.mxu0 %v138
    %1133 = vmatpush.bf16.msra.mxu0 %v137
    %1134 = vmatmul.bf16.gmra.mxu0 %v1124
    %v1135 = vpop.f32.mrf.mxu0
    %v1136 = vadd.f32 0.0, %v1135
    %v1137 = vpop.f32.mrf.mxu0
    %1138 = vdwg.mxu0
    %v1140 = vrot.slane %v1136, 2
    %v1142 = vadd.f32 %v113, %v1140
    %v1143 = vxor.u32 %v1142, 2147483648
    %v1144 = vmul.f32 %v1143, 1.442695
    %v1145 = vpow.pop %v1144
    %v1146 = vadd.f32 %v1145, 1.0
    %v1147 = vrcp.pop %v1146
    %v1148 = vmul.f32 %v1146, %v1147
    %v1149 = vsub.f32 1.0, %v1148
    %v1150 = vmul.f32 %v1147, %v1149
    %v1151 = vadd.f32 %v1147, %v1150
    %vm1152 = vweird.f32 %v1146
    %vm1153 = vweird.f32 %v1147
    %vm1154 = vmor %vm1152, %vm1153
    %v1155 = vsel %vm1154, %v1147, %v1151
    %v1156 = vand.u32 2147483647, %v1146
    %vm1157 = vcmp.eq.f32.partialorder %v1156, 8.507059e+37
    %v1158 = vand.u32 %v1146, 2147483648
    %v1159 = vor.u32 1.1754944e-38, %v1158
    %v1160 = vsel %vm1157, %v1159, %v1155
    %v1161 = vmul.f32 1.0, %v1160
    %v1162 = vtanh.pop %v1142
    %v1164 = vrot.slane %v1045, 6
    %v1166 = vmul.f32 %v1161, %v1164
    %1168 = vrot.lane.b32.xlu0 %v1162, 64
    %v1169 = vpop.permute.xlu0 %1168
    %v1171 = vmul.f32 %v1161, %v1169
    %1173 = vrot.lane.b32.xlu0 %v1171, 32
    %v1174 = vpop.permute.xlu0 %1173
    %v1176 = vadd.f32 %v1166, %v1174
    %v1177 = vtanh.pop %v1176
    %1179 = vrot.lane.b32.xlu0 %v1177, 64
    %v1180 = vpop.permute.xlu0 %1179
    %v1182 = vmul.f32 %v1161, %v1180
    %v1183 = vpack.c.bf16 %v1114, %v1114
    %v1185 = vrot.slane %v1183, 1
    %1186 = vrot.lane.b32.xlu0 %v1185, 32
    %v1187 = vpop.permute.xlu0 %1186
    %v1189 = vsel %vm97, %v1187, 0
    %1191 = vmatpush.bf16.msra.mxu0 0
    %1192 = vmatpush.bf16.msra.mxu0 0
    %1193 = vmatpush.bf16.msra.mxu0 0
    %1194 = vmatpush.bf16.msra.mxu0 0
    %1195 = vmatpush.bf16.msra.mxu0 0
    %1196 = vmatpush.bf16.msra.mxu0 0
    %1197 = vmatpush.bf16.msra.mxu0 %v211
    %1198 = vmatpush.bf16.msra.mxu0 %v210
    %1199 = vmatmul.bf16.gmra.mxu0 %v1189
    %v1200 = vpop.f32.mrf.mxu0
    %v1201 = vadd.f32 0.0, %v1200
    %v1202 = vpop.f32.mrf.mxu0
    %1203 = vdwg.mxu0
    %v1204 = vadd.f32 %v125, %v1201
    %v1205 = vxor.u32 %v1204, 2147483648
    %v1206 = vmul.f32 %v1205, 1.442695
    %v1207 = vpow.pop %v1206
    %v1208 = vadd.f32 %v1207, 1.0
    %v1209 = vrcp.pop %v1208
    %v1210 = vmul.f32 %v1208, %v1209
    %v1211 = vsub.f32 1.0, %v1210
    %v1212 = vmul.f32 %v1209, %v1211
    %v1213 = vadd.f32 %v1209, %v1212
    %vm1214 = vweird.f32 %v1208
    %vm1215 = vweird.f32 %v1209
    %vm1216 = vmor %vm1214, %vm1215
    %v1217 = vsel %vm1216, %v1209, %v1213
    %v1218 = vand.u32 2147483647, %v1208
    %vm1219 = vcmp.eq.f32.partialorder %v1218, 8.507059e+37
    %v1220 = vand.u32 %v1208, 2147483648
    %v1221 = vor.u32 1.1754944e-38, %v1220
    %v1222 = vsel %vm1219, %v1221, %v1217
    %v1223 = vmul.f32 1.0, %v1222
    %v1224 = vtanh.pop %v1204
    %v1226 = vrot.slane %v1115, 2
    %v1228 = vmul.f32 %v1223, %v1226
    %1230 = vrot.lane.b32.xlu0 %v1224, 64
    %v1231 = vpop.permute.xlu0 %1230
    %v1233 = vmul.f32 %v1223, %v1231
    %1235 = vrot.lane.b32.xlu0 %v1233, 32
    %v1236 = vpop.permute.xlu0 %1235
    %v1238 = vadd.f32 %v1228, %v1236
    %v1239 = vtanh.pop %v1238
    %1241 = vrot.lane.b32.xlu0 %v1239, 64
    %v1242 = vpop.permute.xlu0 %1241
    %v1244 = vmul.f32 %v1223, %v1242
    %v1245 = vsel %vm272, %v1182, 0.0
    %v1246 = vsel %vm199, %v1244, 0.0
    %vm1247 = vcmask 1041408
    %v1248 = vsel %vm1247, %v200, %v414
    %vm1249 = vcmask 1043456
    %v1250 = vsel %vm1249, %v1248, %v556
    %vm1251 = vcmask 1045504
    %v1252 = vsel %vm1251, %v1250, %v695
    %v1253 = vsel %vm1247, %v833, %v974
    %v1254 = vsel %vm1249, %v1253, %v1116
    %v1255 = vsel %vm1251, %v1254, %v1245
    %v1256 = vsel %vm1247, %v1246, %v1117
    %v1257 = vsel %vm1249, %v1256, %v975
    %v1258 = vsel %vm1251, %v1257, %v834
    %v1259 = vsel %vm1247, %v696, %v557
    %v1260 = vsel %vm1249, %v1259, %v415
    %v1261 = vsel %vm1251, %v1260, %v273
    %1264 = vrot.lane.b32.xlu0 %v1252, 32
    %v1265 = vpop.permute.xlu0 %1264
    %1266 = vrot.lane.b32.xlu0 %v1255, 32
    %v1267 = vpop.permute.xlu0 %1266
    %1272 = vrot.lane.b32.xlu0 %v1258, 64
    %v1273 = vpop.permute.xlu0 %1272
    %1274 = vrot.lane.b32.xlu0 %v1261, 64
    %v1275 = vpop.permute.xlu0 %1274
    %v1278 = vsel %vm97, %v1265, %v1273
    %v1279 = vsel %vm97, %v1267, %v1275
    %v1280 = vld [vmem:[%s7] sm:$0xff]
    %v1281 = vld [vmem:[%s7 + $0x8] sm:$0xff]
    %vm1282 = vcmask 523264
    %v1284 = vsel %vm1282, %v1280, 0
    %v1287 = vsel %vm1282, %v1281, 0
    %v1290 = vsel %vm1282, %v1278, 0
    %v1293 = vsel %vm1282, %v1279, 0
    %1295 = vmatpush.xpose.msra.mxu0 0.0
    %1296 = vmatpush.xpose.msra.mxu0 0.0
    %1297 = vmatpush.xpose.msra.mxu0 0.0
    %1298 = vmatpush.xpose.msra.mxu0 0.0
    %1299 = vmatpush.xpose.msra.mxu0 0.0
    %1300 = vmatpush.xpose.msra.mxu0 0.0
    %1301 = vmatpush.xpose.msra.mxu0 0.0
    %1302 = vmatpush.xpose.msra.mxu0 0.0
    %1303 = vmatpush.xpose.msra.mxu0 0.0
    %1304 = vmatpush.xpose.msra.mxu0 0.0
    %1305 = vmatpush.xpose.msra.mxu0 0.0
    %1306 = vmatpush.xpose.msra.mxu0 0.0
    %1307 = vmatpush.xpose.msra.mxu0 0.0
    %1308 = vmatpush.xpose.msra.mxu0 0.0
    %1309 = vmatpush.xpose.msra.mxu0 %v1293
    %1310 = vmatpush.xpose.msra.mxu0 %v1290
    %1311 = vmatmul.f32.gmra.mxu0 %v1284
    %v1312 = vpop.f32.mrf.mxu0
    %v1313 = vadd.f32 0.0, %v1312
    %1314 = vmatmul.f32.gmra.mxu0 %v1287
    %v1315 = vpop.f32.mrf.mxu0
    %v1316 = vadd.f32 0.0, %v1315
    %1317 = vdwg.mxu0
    %v1318 = vld [vmem:[%s2] sm:$0xff]
    %v1319 = vld [vmem:[%s2 + $0x8] sm:$0xff]
    %vm1320 = vcmp.gt.f32.partialorder %v1318, 0.5
    %vm1321 = vcmp.gt.f32.partialorder %v1319, 0.5
    %v1322 = vsel %vm1320, %v1313, -1e+30
    %v1323 = vsel %vm1321, %v1316, -1e+30
    %vm1324 = vcmask 130048
    %v1325 = vsel %vm1324, %v1322, -inf
    %1326 = vmax.xlane.f32.xlu0 %v1325
    %v1327 = vpop.xlane.xlu0 %1326
    %v1328 = vsel %vm1324, %v1323, -inf
    %1329 = vmax.xlane.f32.xlu0 %v1328
    %v1330 = vpop.xlane.xlu0 %1329
    %v1331 = vsub.f32 %v1322, %v1327
    %v1332 = vsub.f32 %v1323, %v1330
    %v1333 = vmul.f32 %v1331, 1.442695
    %v1334 = vpow.pop %v1333
    %v1335 = vmul.f32 %v1332, 1.442695
    %v1336 = vpow.pop %v1335
    %v1337 = vsel %vm1324, %v1334, 0.0
    %1338 = vadd.xlane.f32.xlu0 %v1337
    %v1339 = vpop.xlane.xlu0 %1338
    %v1340 = vsel %vm1324, %v1336, 0.0
    %1341 = vadd.xlane.f32.xlu0 %v1340
    %v1342 = vpop.xlane.xlu0 %1341
    %v1343 = vrcp.pop %v1339
    %v1344 = vrcp.pop %v1342
    %v1345 = vmul.f32 %v1334, %v1343
    %v1346 = vmul.f32 %v1336, %v1344
    %v1348 = vsel %vm1324, %v1345, 0
    %v1351 = vsel %vm1324, %v1346, 0
    %1353 = vmatpush.msra.mxu0 0.0
    %1354 = vmatpush.msra.mxu0 0.0
    %1355 = vmatpush.msra.mxu0 0.0
    %1356 = vmatpush.msra.mxu0 0.0
    %1357 = vmatpush.msra.mxu0 0.0
    %1358 = vmatpush.msra.mxu0 0.0
    %1359 = vmatpush.msra.mxu0 0.0
    %1360 = vmatpush.msra.mxu0 0.0
    %1361 = vmatpush.msra.mxu0 0.0
    %1362 = vmatpush.msra.mxu0 0.0
    %1363 = vmatpush.msra.mxu0 0.0
    %1364 = vmatpush.msra.mxu0 0.0
    %1365 = vmatpush.msra.mxu0 0.0
    %1366 = vmatpush.msra.mxu0 0.0
    %1367 = vmatpush.msra.mxu0 %v1279
    %1368 = vmatpush.msra.mxu0 %v1278
    %1369 = vmatmul.f32.gmra.mxu0 %v1348
    %v1370 = vpop.f32.mrf.mxu0
    %v1371 = vadd.f32 0.0, %v1370
    %1372 = vmatmul.f32.gmra.mxu0 %v1351
    %v1373 = vpop.f32.mrf.mxu0
    %v1374 = vadd.f32 0.0, %v1373
    %1375 = vdwg.mxu0
    %v1376 = vld [vmem:[%s8] sm:$0xff]
    %v1377 = vld [vmem:[%s8 + $0x8] sm:$0xff]
    %v1378 = vld [vmem:[%s8 + $0x10] sm:$0xff]
    %v1379 = vld [vmem:[%s8 + $0x18] sm:$0xff]
    %v1380 = vld [vmem:[%s8 + $0x20] sm:$0xff]
    %v1381 = vld [vmem:[%s8 + $0x28] sm:$0xff]
    %v1382 = vld [vmem:[%s8 + $0x30] sm:$0xff]
    %v1383 = vld [vmem:[%s8 + $0x38] sm:$0xff]
    %v1384 = vld [vmem:[%s9] sm:$0x1]
    %v1386 = vperm.slane %v1384, 0
    %v1389 = vsel %vm1282, %v1371, 0
    %v1392 = vsel %vm1282, %v1374, 0
    %1394 = vmatpush.msra.mxu0 0.0
    %1395 = vmatpush.msra.mxu0 0.0
    %1396 = vmatpush.msra.mxu0 0.0
    %1397 = vmatpush.msra.mxu0 0.0
    %1398 = vmatpush.msra.mxu0 0.0
    %1399 = vmatpush.msra.mxu0 0.0
    %1400 = vmatpush.msra.mxu0 0.0
    %1401 = vmatpush.msra.mxu0 0.0
    %1402 = vmatpush.msra.mxu0 %v1383
    %1403 = vmatpush.msra.mxu0 %v1382
    %1404 = vmatpush.msra.mxu0 %v1381
    %1405 = vmatpush.msra.mxu0 %v1380
    %1406 = vmatpush.msra.mxu0 %v1379
    %1407 = vmatpush.msra.mxu0 %v1378
    %1408 = vmatpush.msra.mxu0 %v1377
    %1409 = vmatpush.msra.mxu0 %v1376
    %1410 = vmatmul.f32.gmra.mxu0 %v1389
    %v1411 = vpop.f32.mrf.mxu0
    %v1412 = vadd.f32 %v1386, %v1411
    %1413 = vmatmul.f32.gmra.mxu0 %v1392
    %v1414 = vpop.f32.mrf.mxu0
    %v1415 = vadd.f32 %v1386, %v1414
    %1416 = vdwg.mxu0
    %v1417 = vmax.f32 %v1412, 0.0
    %v1418 = vmax.f32 %v1415, 0.0
    %v1419 = vld [vmem:[%s10] sm:$0x1]
    %v1421 = vsel %vm1324, %v1419, 0
    %v1424 = vsel %vm1324, %v1417, 0
    %v1427 = vsel %vm1324, %v1418, 0
    %1429 = vmatpush.xpose.msra.mxu0 0.0
    %1430 = vmatpush.xpose.msra.mxu0 0.0
    %1431 = vmatpush.xpose.msra.mxu0 0.0
    %1432 = vmatpush.xpose.msra.mxu0 0.0
    %1433 = vmatpush.xpose.msra.mxu0 0.0
    %1434 = vmatpush.xpose.msra.mxu0 0.0
    %1435 = vmatpush.xpose.msra.mxu0 0.0
    %1436 = vmatpush.xpose.msra.mxu0 0.0
    %1437 = vmatpush.xpose.msra.mxu0 0.0
    %1438 = vmatpush.xpose.msra.mxu0 0.0
    %1439 = vmatpush.xpose.msra.mxu0 0.0
    %1440 = vmatpush.xpose.msra.mxu0 0.0
    %1441 = vmatpush.xpose.msra.mxu0 0.0
    %1442 = vmatpush.xpose.msra.mxu0 0.0
    %1443 = vmatpush.xpose.msra.mxu0 %v1427
    %1444 = vmatpush.xpose.msra.mxu0 %v1424
    %1445 = vmatmul.f32.gmra.mxu0 %v1421
    %v1446 = vpop.f32.mrf.mxu0
    %v1447 = vadd.f32 0.0, %v1446
    %1448 = vdwg.mxu0
    %v1450 = vrot.slane %v1447, 7
    %1451 = vrot.lane.b32.xlu0 %v1450, 120
    %v1452 = vpop.permute.xlu0 %1451
    %vm1454 = vcmask 1040384
    %v1455 = vsel %vm1454, %v1447, %v1452
    %v1456 = vld [vmem:[#allocation2] sm:$0x1]
    %v1458 = vperm.slane %v1456, 0
    %1459 = vset.pattern.permute.xlu0 0
    %1460 = vperm.xlu0 %1459, %v1458
    %v1461 = vpop.permute.xlu0 %1460
    %v1463 = vadd.f32 %v1455, %v1461
    %v1464 = vld [vmem:[%s12] sm:$0xff]
    %vm1465 = vcmask 64512
    %v1467 = vsel %vm1465, %v1463, 0
    %1469 = vmatpush.msra.mxu0 0.0
    %1470 = vmatpush.msra.mxu0 0.0
    %1471 = vmatpush.msra.mxu0 0.0
    %1472 = vmatpush.msra.mxu0 0.0
    %1473 = vmatpush.msra.mxu0 0.0
    %1474 = vmatpush.msra.mxu0 0.0
    %1475 = vmatpush.msra.mxu0 0.0
    %1476 = vmatpush.msra.mxu0 0.0
    %1477 = vmatpush.msra.mxu0 0.0
    %1478 = vmatpush.msra.mxu0 0.0
    %1479 = vmatpush.msra.mxu0 0.0
    %1480 = vmatpush.msra.mxu0 0.0
    %1481 = vmatpush.msra.mxu0 0.0
    %1482 = vmatpush.msra.mxu0 0.0
    %1483 = vmatpush.msra.mxu0 0.0
    %1484 = vmatpush.msra.mxu0 %v1464
    %1485 = vmatmul.f32.gmra.mxu0 %v1467
    %v1486 = vpop.f32.mrf.mxu0
    %v1487 = vadd.f32 0.0, %v1486
    %1488 = vdwg.mxu0
    %v1489 = vmax.f32 %v1487, 0.0
    %v1490 = vadd.f32 %v1489, %v1463
    %vm1491 = vcmask 58368
    %1492 = vst.msk [vmem:[#allocation3] sm:$0x3] %vm1491, %v1490
    // Predicated region
    $region54: #{ease_attention_rnn_forward.1} parent=1 // pred_check
      _
    $region55: #{ease_attention_rnn_forward.1} parent=1 // pred_check_branch
      %1494 = sbr.rel (0) target = $region57
    $region56: #{ease_attention_rnn_forward.1} parent=1 // pred_region
      %1496 = vsyncadd [#allocation4], 0
      %s1498 = sshll.u32 [#allocation3], 4
      %s1499 = int_to_ptr.vmem [resolvable:$true] %s1498
      %s1500 = sshll.u32 %s13, 4
      %s1501 = int_to_ptr.hbm [resolvable:$true] %s1500
      %1503 = dma.vmem_to_hbm [thread:$0]  %s1499, 32, %s1501, [#allocation4]
    $region57: #{ease_attention_rnn_forward.1} parent=1 // pred_fallthru
      _
    // Predicated region
    $region58: #{ease_attention_rnn_forward.1} parent=1 // pred_check
      _
    $region59: #{ease_attention_rnn_forward.1} parent=1 // pred_check_branch
      %1505 = sbr.rel (0) target = $region61
    $region60: #{ease_attention_rnn_forward.1} parent=1 // pred_region
      %1507 = dma.done [#allocation4], 32
    $region61: #{ease_attention_rnn_forward.1} parent=1 // pred_fallthru
      _
    %1508 = vsyncpa [#allocation4], 1

</llo_original>
